<compile_context>
chip_gen: v5e
topology: v5e:2x2
jax: 0.10.0
libtpu: 0.0.40
codegen_flags: <defaults>
</compile_context>

<pallas_src>
import jax
import jax.numpy as jnp
from jax import lax
from jax.experimental import pallas as pl
from jax.experimental.pallas import tpu as pltpu


# ----------------------------------------------------------------------------- config
def _tpu_generation():
    try:
        kind = (jax.devices()[0].device_kind or "").lower()
    except Exception:
        kind = ""
    if "v7" in kind or "7x" in kind:
        return "v7"
    if "v5" in kind:
        return "v5"
    return "v6"


def _gen_params():
    g = _tpu_generation()
    if g == "v7":
        # 64 MiB physical VMEM -> leave headroom; 3.2 TB/s HBM -> big steps; 2 TCs.
        return dict(vmem_cap=44 << 20, step_bytes=10 << 20, mxu_min=32, two_core=True)
    if g == "v5":
        # ~0.82 TB/s HBM and a single store slot -> modest steps; small MXU wins earlier.
        return dict(vmem_cap=64 << 20, step_bytes=3 << 20, mxu_min=16, two_core=False)
    # v6e defaults.
    return dict(vmem_cap=64 << 20, step_bytes=5 << 20, mxu_min=32, two_core=False)


def _divisor_chunk(s, target):
    """Largest chunk <= target that divides s (prefer multiples of 8)."""
    if s <= target:
        return s
    for d in range(target, 7, -1):
        if d % 8 == 0 and s % d == 0:
            return d
    for d in range(target, 0, -1):
        if s % d == 0:
            return d
    return s


# ----------------------------------------------------------------------------- kernels
def _make_vpu_kernel_3d(C, Ch, NB, S, chunk):
    """Sublane-dense VPU kernel.

    x_ref/o_ref : (NB, C, S, 128)  each per-channel slab is (S, 128) -> full vregs.
    w1_ref (Ch,C), b1_ref (Ch,), w2_ref (C,Ch), b2_ref (C,) : SMEM scalars.
    The channel contraction is strip-mined over `chunk` rows so x/h/y partials stay
    in vregs instead of spilling (Ch, tile) intermediates through VMEM.
    """
    n_chunks = S // chunk
    assert n_chunks * chunk == S

    def kernel(x_ref, w1_ref, b1_ref, w2_ref, b2_ref, o_ref):
        # Hoist the tiny folded weights/biases once per grid step (SMEM scalar reads).
        w1 = [[w1_ref[o, c] for c in range(C)] for o in range(Ch)]
        b1 = [b1_ref[o] for o in range(Ch)]
        w2 = [[w2_ref[c, o] for o in range(Ch)] for c in range(C)]
        b2 = [b2_ref[c] for c in range(C)]

        def chunk_body(nb, r0):
            xs = [x_ref[nb, c, pl.ds(r0, chunk), :].astype(jnp.float32)
                  for c in range(C)]
            # conv1 (+folded BN1) -> ReLU, accumulated in vregs
            hs = []
            for o in range(Ch):
                acc = xs[0] * w1[o][0]
                for c in range(1, C):
                    acc = acc + xs[c] * w1[o][c]
                hs.append(jnp.maximum(acc + b1[o], 0.0))
            # conv2 (+folded BN2) -> +residual -> ReLU, stored one channel at a time
            for c in range(C):
                acc = hs[0] * w2[c][0]
                for o in range(1, Ch):
                    acc = acc + hs[o] * w2[c][o]
                y = jnp.maximum(acc + b2[c] + xs[c], 0.0)
                o_ref[nb, c, pl.ds(r0, chunk), :] = y.astype(o_ref.dtype)

        for nb in range(NB):
            if n_chunks == 1:
                chunk_body(nb, 0)
            else:
                def body(j, carry, nb=nb):
                    chunk_body(nb, pl.multiple_of(j * chunk, chunk))
                    return carry
                lax.fori_loop(0, n_chunks, body, 0,
                              unroll=2 if n_chunks % 2 == 0 else 1)

    return kernel


def _make_kernel_2d(C, Ch, use_mxu):
    """2D-layout kernel: x tile (C, tile) with spatial on lanes.

    Used for the MXU path (large channel counts) and as the fallback when H*W is not a
    multiple of 128.  Weights/biases arrive as small VMEM blocks.
    """

    def kernel(x_ref, w1_ref, b1_ref, w2_ref, b2_ref, o_ref):
        x = x_ref[...].astype(jnp.float32)        # (C, tile)
        w1 = w1_ref[...].astype(jnp.float32)      # (Ch, C)
        w2 = w2_ref[...].astype(jnp.float32)      # (C, Ch)
        b1 = b1_ref[...].astype(jnp.float32)      # (Ch, 1)
        b2 = b2_ref[...].astype(jnp.float32)      # (C, 1)
        m = x.shape[1]

        if use_mxu:
            # f32 operands need HIGHEST precision to match the f32 reference.
            # TODO(synk): with bf16 activations feed bf16 operands (f32 accum) for
            #             ~3x MXU throughput and half the operand footprint.
            h = jnp.dot(w1, x, preferred_element_type=jnp.float32,
                        precision=jax.lax.Precision.HIGHEST) + b1
            h = jnp.maximum(h, 0.0)
            y = jnp.dot(w2, h, preferred_element_type=jnp.float32,
                        precision=jax.lax.Precision.HIGHEST) + b2
        else:
            h = jnp.broadcast_to(b1, (Ch, m))
            for c in range(C):
                h = h + w1[:, c:c + 1] * x[c:c + 1, :]
            h = jnp.maximum(h, 0.0)
            y = jnp.broadcast_to(b2, (C, m))
            for o in range(Ch):
                y = y + w2[:, o:o + 1] * h[o:o + 1, :]

        o_ref[...] = jnp.maximum(y + x, 0.0).astype(o_ref.dtype)

    return kernel


# ----------------------------------------------------------------------------- wrapper
def init_params(key, in_channels, hidden_channels):
    k1, k2, k3, k4, k5, k6, k7, k8 = jax.random.split(key, 8)
    return {
        # conv weights: PyTorch layout (out, in, 1, 1)
        "w1": 0.1 * jax.random.normal(k1, (hidden_channels, in_channels, 1, 1), jnp.float32),
        "w2": 0.1 * jax.random.normal(k2, (in_channels, hidden_channels, 1, 1), jnp.float32),
        "bn1_gamma": 1.0 + 0.1 * jax.random.normal(k3, (hidden_channels,), jnp.float32),
        "bn1_beta": 0.1 * jax.random.normal(k4, (hidden_channels,), jnp.float32),
        "bn1_mean": 0.1 * jax.random.normal(k5, (hidden_channels,), jnp.float32),
        "bn1_var": 0.5 + jnp.abs(jax.random.normal(k6, (hidden_channels,), jnp.float32)),
        "bn2_gamma": 1.0 + 0.1 * jax.random.normal(k7, (in_channels,), jnp.float32),
        "bn2_beta": 0.1 * jax.random.normal(k8, (in_channels,), jnp.float32),
        "bn2_mean": jnp.linspace(-0.2, 0.2, in_channels, dtype=jnp.float32),
        "bn2_var": jnp.linspace(0.5, 1.5, in_channels, dtype=jnp.float32),
    }


def adapter3_forward(x_nchw, params, *, eps=1e-5, rows_per_block=None):
    """Fused Adapter3 forward.  `rows_per_block` is a testing/tuning override that caps
    the number of 128-lane rows per block on the sublane-dense path."""
    N, C, H, W = x_nchw.shape
    Ch = params["w1"].shape[0]
    HW = H * W
    dtype = x_nchw.dtype
    elem = jnp.dtype(dtype).itemsize

    gen = _gen_params()
    block_budget = int(0.70 * gen["vmem_cap"])     # room for double-buffered blocks
    step_bytes = gen["step_bytes"]

    # Fold inference-mode BN: scale into conv weights, shift as per-channel bias.
    s1 = params["bn1_gamma"] / jnp.sqrt(params["bn1_var"] + eps)
    b1 = params["bn1_beta"] - params["bn1_mean"] * s1                    # (Ch,)
    s2 = params["bn2_gamma"] / jnp.sqrt(params["bn2_var"] + eps)
    b2 = params["bn2_beta"] - params["bn2_mean"] * s2                    # (C,)
    w1 = (params["w1"].reshape(Ch, C) * s1[:, None]).astype(jnp.float32)  # (Ch, C)
    w2 = (params["w2"].reshape(C, Ch) * s2[:, None]).astype(jnp.float32)  # (C, Ch)

    # MXU only when the contraction is big enough to be worth a pass (per-generation).
    use_mxu = min(C, Ch) >= gen["mxu_min"] or max(C, Ch) >= 128

    if (not use_mxu) and (HW % 128 == 0):
        # ---------------- sublane-dense VPU path ----------------
        R = HW // 128                          # number of 128-lane rows per channel
        row_bytes = C * 128 * elem             # one row across all channels, one buffer
        chunk_t = min(64, max(8, 8 * max(1, 40 // max(1, 2 * C + Ch))))

        S = min(R,
                max(1, step_bytes // (2 * row_bytes)),       # per-step byte target
                max(1, block_budget // (4 * row_bytes)))     # dbuf in+out fits VMEM
        if rows_per_block is not None:
            S = max(1, min(R, rows_per_block))

        NB = 1
        if S >= R:
            S, chunk = R, _divisor_chunk(R, chunk_t)
            if rows_per_block is None:
                # Whole spatial extent fits: grow a batch sub-block to hit the target.
                img_bytes = 2 * C * R * 128 * elem           # in + out for one image
                NB = max(1, min(N,
                                step_bytes // max(1, img_bytes),
                                block_budget // max(1, 2 * img_bytes)))
        else:
            S = max(chunk_t, (S // chunk_t) * chunk_t)       # uniform, 8-aligned chunks
            chunk = chunk_t
            if S >= R:
                S, chunk = R, _divisor_chunk(R, chunk_t)

        # Keep both TensorCores busy on dual-core chips (v7x).
        if gen["two_core"] and pl.cdiv(N, NB) * pl.cdiv(R, S) < 2:
            if NB > 1:
                NB = (N + 1) // 2
            elif R >= 2 * chunk_t:
                S = (((R + 1) // 2) // chunk_t) * chunk_t
                chunk = chunk_t

        grid = (pl.cdiv(N, NB), pl.cdiv(R, S))
        kernel = _make_vpu_kernel_3d(C, Ch, NB, S, chunk)
        x4d = x_nchw.reshape(N, C, R, 128)      # pure reshape, no extra HBM traffic

        out = pl.pallas_call(
            kernel,
            out_shape=jax.ShapeDtypeStruct((N, C, R, 128), dtype),
            grid_spec=pltpu.PrefetchScalarGridSpec(
                num_scalar_prefetch=0,
                grid=grid,
                in_specs=[
                    pl.BlockSpec((NB, C, S, 128), lambda n, j: (n, 0, j, 0)),
                    pl.BlockSpec(memory_space=pltpu.MemorySpace.SMEM),   # w1 (Ch,C)
                    pl.BlockSpec(memory_space=pltpu.MemorySpace.SMEM),   # b1 (Ch,)
                    pl.BlockSpec(memory_space=pltpu.MemorySpace.SMEM),   # w2 (C,Ch)
                    pl.BlockSpec(memory_space=pltpu.MemorySpace.SMEM),   # b2 (C,)
                ],
                out_specs=pl.BlockSpec((NB, C, S, 128), lambda n, j: (n, 0, j, 0)),
            ),
            compiler_params=pltpu.CompilerParams(
                dimension_semantics=("parallel", "parallel"),
                vmem_limit_bytes=gen["vmem_cap"],
            ),
        )(x4d, w1, b1, w2, b2)
        return out.reshape(N, C, H, W)

    # ---------------- 2D path: MXU (big channels) or lane fallback ----------------
    x3d = x_nchw.reshape(N, C, HW)
    if HW <= 128:
        tile = HW   # TODO(synk): pack several batch images per block for tiny H*W
    else:
        per_lane = 4 * C * elem + (Ch + 2 * C) * 4   # dbuf in/out + f32 intermediates
        tile = min(max(1, step_bytes // (2 * C * elem)),
                   max(1, block_budget // per_lane))
        if not use_mxu:
            tile = min(tile, 2048)                   # bound spills of the full-tile MAC
        tile = max(128, (tile // 128) * 128)
        if tile > HW:
            tile = HW
        if gen["two_core"] and N * pl.cdiv(HW, tile) < 2 and HW >= 256:
            tile = 128 * pl.cdiv(pl.cdiv(HW, 2), 128)

    grid = (N, pl.cdiv(HW, tile))
    kernel = _make_kernel_2d(C, Ch, use_mxu)
    out = pl.pallas_call(
        kernel,
        out_shape=jax.ShapeDtypeStruct((N, C, HW), dtype),
        grid_spec=pltpu.PrefetchScalarGridSpec(
            num_scalar_prefetch=0,
            grid=grid,
            in_specs=[
                pl.BlockSpec((None, C, tile), lambda n, j: (n, 0, j)),
                pl.BlockSpec((Ch, C), lambda n, j: (0, 0)),
                pl.BlockSpec((Ch, 1), lambda n, j: (0, 0)),
                pl.BlockSpec((C, Ch), lambda n, j: (0, 0)),
                pl.BlockSpec((C, 1), lambda n, j: (0, 0)),
            ],
            out_specs=pl.BlockSpec((None, C, tile), lambda n, j: (n, 0, j)),
        ),
        compiler_params=pltpu.CompilerParams(
            dimension_semantics=("parallel", "parallel"),
            vmem_limit_bytes=gen["vmem_cap"],
        ),
    )(x3d, w1, b1.reshape(Ch, 1), w2, b2.reshape(C, 1))
    return out.reshape(N, C, H, W)


# ----------------------------------------------------------------------------- reference
def adapter3_reference(x_nchw, params, eps=1e-5):
    """Pure-JAX reference (NCHW, inference-mode BN), f32-exact (HIGHEST precision)."""
    C = x_nchw.shape[1]
    Ch = params["w1"].shape[0]
    w1 = params["w1"].reshape(Ch, C)
    w2 = params["w2"].reshape(C, Ch)
    hi = jax.lax.Precision.HIGHEST

    def bn(y, g, b, m, v):
        g, b, m, v = (t.reshape(1, -1, 1, 1) for t in (g, b, m, v))
        return (y - m) / jnp.sqrt(v + eps) * g + b

    h = jnp.einsum("oc,nchw->nohw", w1, x_nchw, precision=hi)
    h = jax.nn.relu(bn(h, params["bn1_gamma"], params["bn1_beta"],
                       params["bn1_mean"], params["bn1_var"]))
    y = jnp.einsum("oc,nchw->nohw", w2, h, precision=hi)
    y = bn(y, params["bn2_gamma"], params["bn2_beta"],
           params["bn2_mean"], params["bn2_var"])
    return jax.nn.relu(y + x_nchw)


# ----------------------------------------------------------------------------- main
if __name__ == "__main__":
    key = jax.random.PRNGKey(0)

    # (name, shape dict, tolerance, extra forward kwargs)
    cases = [
        ("vpu_sublane_dense",        dict(N=2, C=4,  H=16,  W=16, hidden=8),  1e-4, {}),
        ("vpu_strip_mined_partial",  dict(N=1, C=4,  H=128, W=40, hidden=8),  1e-4,
         {"rows_per_block": 32}),
        ("mxu_path",                 dict(N=2, C=64, H=16,  W=16, hidden=64), 1e-3, {}),
        ("lane_fallback_partial",    dict(N=2, C=4,  H=47,  W=47, hidden=8),  1e-4, {}),
    ]

    for idx, (name, s, tol, kw) in enumerate(cases):
        kx, kp = jax.random.split(jax.random.fold_in(key, idx))
        x = jax.random.normal(kx, (s["N"], s["C"], s["H"], s["W"]), jnp.float32)
        params = init_params(kp, s["C"], s["hidden"])

        out = jax.block_until_ready(adapter3_forward(x, params, **kw))
        ref = adapter3_reference(x, params)

        assert out.shape == x.shape, f"{name}: wrong output shape {out.shape}"
        assert jnp.allclose(out, ref, atol=tol, rtol=tol), f"{name}: mismatch vs reference"

    print("KERNEL_OK")
</pallas_src>

<mosaic_0001>
module attributes {stable_mosaic.version = 11 : i64} {
  func.func @kernel(%arg0: i32, %arg1: i32, %arg2: memref<2x4x2x128xf32, #tpu.memory_space<vmem>>, %arg3: memref<8x4xf32, #tpu.memory_space<smem>>, %arg4: memref<8xf32, #tpu.memory_space<smem>>, %arg5: memref<4x8xf32, #tpu.memory_space<smem>>, %arg6: memref<4xf32, #tpu.memory_space<smem>>, %arg7: memref<2x4x2x128xf32, #tpu.memory_space<vmem>>) attributes {dimension_semantics = [#tpu.dimension_semantics<parallel>, #tpu.dimension_semantics<parallel>], iteration_bounds = array<i64: 1, 1>, scalar_prefetch = 0 : i64, scratch_operands = 0 : i64, tpu.core_type = #tpu.core_type<tc>, window_params = [{transform_indices = @transform_0, window_bounds = array<i64: 2, 4, 2, 128>}, {transform_indices = @transform_1, window_bounds = array<i64: 8, 4>}, {transform_indices = @transform_2, window_bounds = array<i64: 8>}, {transform_indices = @transform_3, window_bounds = array<i64: 4, 8>}, {transform_indices = @transform_4, window_bounds = array<i64: 4>}, {transform_indices = @transform_5, window_bounds = array<i64: 2, 4, 2, 128>}]} {
    %c0 = arith.constant 0 : index
    %c0_0 = arith.constant 0 : index
    %0 = memref.load %arg3[%c0, %c0_0] : memref<8x4xf32, #tpu.memory_space<smem>>
    %c0_1 = arith.constant 0 : index
    %c1 = arith.constant 1 : index
    %1 = memref.load %arg3[%c0_1, %c1] : memref<8x4xf32, #tpu.memory_space<smem>>
    %c0_2 = arith.constant 0 : index
    %c2 = arith.constant 2 : index
    %2 = memref.load %arg3[%c0_2, %c2] : memref<8x4xf32, #tpu.memory_space<smem>>
    %c0_3 = arith.constant 0 : index
    %c3 = arith.constant 3 : index
    %3 = memref.load %arg3[%c0_3, %c3] : memref<8x4xf32, #tpu.memory_space<smem>>
    %c1_4 = arith.constant 1 : index
    %c0_5 = arith.constant 0 : index
    %4 = memref.load %arg3[%c1_4, %c0_5] : memref<8x4xf32, #tpu.memory_space<smem>>
    %c1_6 = arith.constant 1 : index
    %c1_7 = arith.constant 1 : index
    %5 = memref.load %arg3[%c1_6, %c1_7] : memref<8x4xf32, #tpu.memory_space<smem>>
    %c1_8 = arith.constant 1 : index
    %c2_9 = arith.constant 2 : index
    %6 = memref.load %arg3[%c1_8, %c2_9] : memref<8x4xf32, #tpu.memory_space<smem>>
    %c1_10 = arith.constant 1 : index
    %c3_11 = arith.constant 3 : index
    %7 = memref.load %arg3[%c1_10, %c3_11] : memref<8x4xf32, #tpu.memory_space<smem>>
    %c2_12 = arith.constant 2 : index
    %c0_13 = arith.constant 0 : index
    %8 = memref.load %arg3[%c2_12, %c0_13] : memref<8x4xf32, #tpu.memory_space<smem>>
    %c2_14 = arith.constant 2 : index
    %c1_15 = arith.constant 1 : index
    %9 = memref.load %arg3[%c2_14, %c1_15] : memref<8x4xf32, #tpu.memory_space<smem>>
    %c2_16 = arith.constant 2 : index
    %c2_17 = arith.constant 2 : index
    %10 = memref.load %arg3[%c2_16, %c2_17] : memref<8x4xf32, #tpu.memory_space<smem>>
    %c2_18 = arith.constant 2 : index
    %c3_19 = arith.constant 3 : index
    %11 = memref.load %arg3[%c2_18, %c3_19] : memref<8x4xf32, #tpu.memory_space<smem>>
    %c3_20 = arith.constant 3 : index
    %c0_21 = arith.constant 0 : index
    %12 = memref.load %arg3[%c3_20, %c0_21] : memref<8x4xf32, #tpu.memory_space<smem>>
    %c3_22 = arith.constant 3 : index
    %c1_23 = arith.constant 1 : index
    %13 = memref.load %arg3[%c3_22, %c1_23] : memref<8x4xf32, #tpu.memory_space<smem>>
    %c3_24 = arith.constant 3 : index
    %c2_25 = arith.constant 2 : index
    %14 = memref.load %arg3[%c3_24, %c2_25] : memref<8x4xf32, #tpu.memory_space<smem>>
    %c3_26 = arith.constant 3 : index
    %c3_27 = arith.constant 3 : index
    %15 = memref.load %arg3[%c3_26, %c3_27] : memref<8x4xf32, #tpu.memory_space<smem>>
    %c4 = arith.constant 4 : index
    %c0_28 = arith.constant 0 : index
    %16 = memref.load %arg3[%c4, %c0_28] : memref<8x4xf32, #tpu.memory_space<smem>>
    %c4_29 = arith.constant 4 : index
    %c1_30 = arith.constant 1 : index
    %17 = memref.load %arg3[%c4_29, %c1_30] : memref<8x4xf32, #tpu.memory_space<smem>>
    %c4_31 = arith.constant 4 : index
    %c2_32 = arith.constant 2 : index
    %18 = memref.load %arg3[%c4_31, %c2_32] : memref<8x4xf32, #tpu.memory_space<smem>>
    %c4_33 = arith.constant 4 : index
    %c3_34 = arith.constant 3 : index
    %19 = memref.load %arg3[%c4_33, %c3_34] : memref<8x4xf32, #tpu.memory_space<smem>>
    %c5 = arith.constant 5 : index
    %c0_35 = arith.constant 0 : index
    %20 = memref.load %arg3[%c5, %c0_35] : memref<8x4xf32, #tpu.memory_space<smem>>
    %c5_36 = arith.constant 5 : index
    %c1_37 = arith.constant 1 : index
    %21 = memref.load %arg3[%c5_36, %c1_37] : memref<8x4xf32, #tpu.memory_space<smem>>
    %c5_38 = arith.constant 5 : index
    %c2_39 = arith.constant 2 : index
    %22 = memref.load %arg3[%c5_38, %c2_39] : memref<8x4xf32, #tpu.memory_space<smem>>
    %c5_40 = arith.constant 5 : index
    %c3_41 = arith.constant 3 : index
    %23 = memref.load %arg3[%c5_40, %c3_41] : memref<8x4xf32, #tpu.memory_space<smem>>
    %c6 = arith.constant 6 : index
    %c0_42 = arith.constant 0 : index
    %24 = memref.load %arg3[%c6, %c0_42] : memref<8x4xf32, #tpu.memory_space<smem>>
    %c6_43 = arith.constant 6 : index
    %c1_44 = arith.constant 1 : index
    %25 = memref.load %arg3[%c6_43, %c1_44] : memref<8x4xf32, #tpu.memory_space<smem>>
    %c6_45 = arith.constant 6 : index
    %c2_46 = arith.constant 2 : index
    %26 = memref.load %arg3[%c6_45, %c2_46] : memref<8x4xf32, #tpu.memory_space<smem>>
    %c6_47 = arith.constant 6 : index
    %c3_48 = arith.constant 3 : index
    %27 = memref.load %arg3[%c6_47, %c3_48] : memref<8x4xf32, #tpu.memory_space<smem>>
    %c7 = arith.constant 7 : index
    %c0_49 = arith.constant 0 : index
    %28 = memref.load %arg3[%c7, %c0_49] : memref<8x4xf32, #tpu.memory_space<smem>>
    %c7_50 = arith.constant 7 : index
    %c1_51 = arith.constant 1 : index
    %29 = memref.load %arg3[%c7_50, %c1_51] : memref<8x4xf32, #tpu.memory_space<smem>>
    %c7_52 = arith.constant 7 : index
    %c2_53 = arith.constant 2 : index
    %30 = memref.load %arg3[%c7_52, %c2_53] : memref<8x4xf32, #tpu.memory_space<smem>>
    %c7_54 = arith.constant 7 : index
    %c3_55 = arith.constant 3 : index
    %31 = memref.load %arg3[%c7_54, %c3_55] : memref<8x4xf32, #tpu.memory_space<smem>>
    %c0_56 = arith.constant 0 : index
    %32 = memref.load %arg4[%c0_56] : memref<8xf32, #tpu.memory_space<smem>>
    %c1_57 = arith.constant 1 : index
    %33 = memref.load %arg4[%c1_57] : memref<8xf32, #tpu.memory_space<smem>>
    %c2_58 = arith.constant 2 : index
    %34 = memref.load %arg4[%c2_58] : memref<8xf32, #tpu.memory_space<smem>>
    %c3_59 = arith.constant 3 : index
    %35 = memref.load %arg4[%c3_59] : memref<8xf32, #tpu.memory_space<smem>>
    %c4_60 = arith.constant 4 : index
    %36 = memref.load %arg4[%c4_60] : memref<8xf32, #tpu.memory_space<smem>>
    %c5_61 = arith.constant 5 : index
    %37 = memref.load %arg4[%c5_61] : memref<8xf32, #tpu.memory_space<smem>>
    %c6_62 = arith.constant 6 : index
    %38 = memref.load %arg4[%c6_62] : memref<8xf32, #tpu.memory_space<smem>>
    %c7_63 = arith.constant 7 : index
    %39 = memref.load %arg4[%c7_63] : memref<8xf32, #tpu.memory_space<smem>>
    %c0_64 = arith.constant 0 : index
    %c0_65 = arith.constant 0 : index
    %40 = memref.load %arg5[%c0_64, %c0_65] : memref<4x8xf32, #tpu.memory_space<smem>>
    %c0_66 = arith.constant 0 : index
    %c1_67 = arith.constant 1 : index
    %41 = memref.load %arg5[%c0_66, %c1_67] : memref<4x8xf32, #tpu.memory_space<smem>>
    %c0_68 = arith.constant 0 : index
    %c2_69 = arith.constant 2 : index
    %42 = memref.load %arg5[%c0_68, %c2_69] : memref<4x8xf32, #tpu.memory_space<smem>>
    %c0_70 = arith.constant 0 : index
    %c3_71 = arith.constant 3 : index
    %43 = memref.load %arg5[%c0_70, %c3_71] : memref<4x8xf32, #tpu.memory_space<smem>>
    %c0_72 = arith.constant 0 : index
    %c4_73 = arith.constant 4 : index
    %44 = memref.load %arg5[%c0_72, %c4_73] : memref<4x8xf32, #tpu.memory_space<smem>>
    %c0_74 = arith.constant 0 : index
    %c5_75 = arith.constant 5 : index
    %45 = memref.load %arg5[%c0_74, %c5_75] : memref<4x8xf32, #tpu.memory_space<smem>>
    %c0_76 = arith.constant 0 : index
    %c6_77 = arith.constant 6 : index
    %46 = memref.load %arg5[%c0_76, %c6_77] : memref<4x8xf32, #tpu.memory_space<smem>>
    %c0_78 = arith.constant 0 : index
    %c7_79 = arith.constant 7 : index
    %47 = memref.load %arg5[%c0_78, %c7_79] : memref<4x8xf32, #tpu.memory_space<smem>>
    %c1_80 = arith.constant 1 : index
    %c0_81 = arith.constant 0 : index
    %48 = memref.load %arg5[%c1_80, %c0_81] : memref<4x8xf32, #tpu.memory_space<smem>>
    %c1_82 = arith.constant 1 : index
    %c1_83 = arith.constant 1 : index
    %49 = memref.load %arg5[%c1_82, %c1_83] : memref<4x8xf32, #tpu.memory_space<smem>>
    %c1_84 = arith.constant 1 : index
    %c2_85 = arith.constant 2 : index
    %50 = memref.load %arg5[%c1_84, %c2_85] : memref<4x8xf32, #tpu.memory_space<smem>>
    %c1_86 = arith.constant 1 : index
    %c3_87 = arith.constant 3 : index
    %51 = memref.load %arg5[%c1_86, %c3_87] : memref<4x8xf32, #tpu.memory_space<smem>>
    %c1_88 = arith.constant 1 : index
    %c4_89 = arith.constant 4 : index
    %52 = memref.load %arg5[%c1_88, %c4_89] : memref<4x8xf32, #tpu.memory_space<smem>>
    %c1_90 = arith.constant 1 : index
    %c5_91 = arith.constant 5 : index
    %53 = memref.load %arg5[%c1_90, %c5_91] : memref<4x8xf32, #tpu.memory_space<smem>>
    %c1_92 = arith.constant 1 : index
    %c6_93 = arith.constant 6 : index
    %54 = memref.load %arg5[%c1_92, %c6_93] : memref<4x8xf32, #tpu.memory_space<smem>>
    %c1_94 = arith.constant 1 : index
    %c7_95 = arith.constant 7 : index
    %55 = memref.load %arg5[%c1_94, %c7_95] : memref<4x8xf32, #tpu.memory_space<smem>>
    %c2_96 = arith.constant 2 : index
    %c0_97 = arith.constant 0 : index
    %56 = memref.load %arg5[%c2_96, %c0_97] : memref<4x8xf32, #tpu.memory_space<smem>>
    %c2_98 = arith.constant 2 : index
    %c1_99 = arith.constant 1 : index
    %57 = memref.load %arg5[%c2_98, %c1_99] : memref<4x8xf32, #tpu.memory_space<smem>>
    %c2_100 = arith.constant 2 : index
    %c2_101 = arith.constant 2 : index
    %58 = memref.load %arg5[%c2_100, %c2_101] : memref<4x8xf32, #tpu.memory_space<smem>>
    %c2_102 = arith.constant 2 : index
    %c3_103 = arith.constant 3 : index
    %59 = memref.load %arg5[%c2_102, %c3_103] : memref<4x8xf32, #tpu.memory_space<smem>>
    %c2_104 = arith.constant 2 : index
    %c4_105 = arith.constant 4 : index
    %60 = memref.load %arg5[%c2_104, %c4_105] : memref<4x8xf32, #tpu.memory_space<smem>>
    %c2_106 = arith.constant 2 : index
    %c5_107 = arith.constant 5 : index
    %61 = memref.load %arg5[%c2_106, %c5_107] : memref<4x8xf32, #tpu.memory_space<smem>>
    %c2_108 = arith.constant 2 : index
    %c6_109 = arith.constant 6 : index
    %62 = memref.load %arg5[%c2_108, %c6_109] : memref<4x8xf32, #tpu.memory_space<smem>>
    %c2_110 = arith.constant 2 : index
    %c7_111 = arith.constant 7 : index
    %63 = memref.load %arg5[%c2_110, %c7_111] : memref<4x8xf32, #tpu.memory_space<smem>>
    %c3_112 = arith.constant 3 : index
    %c0_113 = arith.constant 0 : index
    %64 = memref.load %arg5[%c3_112, %c0_113] : memref<4x8xf32, #tpu.memory_space<smem>>
    %c3_114 = arith.constant 3 : index
    %c1_115 = arith.constant 1 : index
    %65 = memref.load %arg5[%c3_114, %c1_115] : memref<4x8xf32, #tpu.memory_space<smem>>
    %c3_116 = arith.constant 3 : index
    %c2_117 = arith.constant 2 : index
    %66 = memref.load %arg5[%c3_116, %c2_117] : memref<4x8xf32, #tpu.memory_space<smem>>
    %c3_118 = arith.constant 3 : index
    %c3_119 = arith.constant 3 : index
    %67 = memref.load %arg5[%c3_118, %c3_119] : memref<4x8xf32, #tpu.memory_space<smem>>
    %c3_120 = arith.constant 3 : index
    %c4_121 = arith.constant 4 : index
    %68 = memref.load %arg5[%c3_120, %c4_121] : memref<4x8xf32, #tpu.memory_space<smem>>
    %c3_122 = arith.constant 3 : index
    %c5_123 = arith.constant 5 : index
    %69 = memref.load %arg5[%c3_122, %c5_123] : memref<4x8xf32, #tpu.memory_space<smem>>
    %c3_124 = arith.constant 3 : index
    %c6_125 = arith.constant 6 : index
    %70 = memref.load %arg5[%c3_124, %c6_125] : memref<4x8xf32, #tpu.memory_space<smem>>
    %c3_126 = arith.constant 3 : index
    %c7_127 = arith.constant 7 : index
    %71 = memref.load %arg5[%c3_126, %c7_127] : memref<4x8xf32, #tpu.memory_space<smem>>
    %c0_128 = arith.constant 0 : index
    %72 = memref.load %arg6[%c0_128] : memref<4xf32, #tpu.memory_space<smem>>
    %c1_129 = arith.constant 1 : index
    %73 = memref.load %arg6[%c1_129] : memref<4xf32, #tpu.memory_space<smem>>
    %c2_130 = arith.constant 2 : index
    %74 = memref.load %arg6[%c2_130] : memref<4xf32, #tpu.memory_space<smem>>
    %c3_131 = arith.constant 3 : index
    %75 = memref.load %arg6[%c3_131] : memref<4xf32, #tpu.memory_space<smem>>
    %c0_132 = arith.constant 0 : index
    %c0_133 = arith.constant 0 : index
    %c0_134 = arith.constant 0 : index
    %c0_135 = arith.constant 0 : index
    %76 = vector.load %arg2[%c0_132, %c0_133, %c0_134, %c0_135] : memref<2x4x2x128xf32, #tpu.memory_space<vmem>>, vector<1x1x2x128xf32>
    %77 = vector.shape_cast %76 : vector<1x1x2x128xf32> to vector<2x128xf32>
    %c0_136 = arith.constant 0 : index
    %c1_137 = arith.constant 1 : index
    %c0_138 = arith.constant 0 : index
    %c0_139 = arith.constant 0 : index
    %78 = vector.load %arg2[%c0_136, %c1_137, %c0_138, %c0_139] : memref<2x4x2x128xf32, #tpu.memory_space<vmem>>, vector<1x1x2x128xf32>
    %79 = vector.shape_cast %78 : vector<1x1x2x128xf32> to vector<2x128xf32>
    %c0_140 = arith.constant 0 : index
    %c2_141 = arith.constant 2 : index
    %c0_142 = arith.constant 0 : index
    %c0_143 = arith.constant 0 : index
    %80 = vector.load %arg2[%c0_140, %c2_141, %c0_142, %c0_143] : memref<2x4x2x128xf32, #tpu.memory_space<vmem>>, vector<1x1x2x128xf32>
    %81 = vector.shape_cast %80 : vector<1x1x2x128xf32> to vector<2x128xf32>
    %c0_144 = arith.constant 0 : index
    %c3_145 = arith.constant 3 : index
    %c0_146 = arith.constant 0 : index
    %c0_147 = arith.constant 0 : index
    %82 = vector.load %arg2[%c0_144, %c3_145, %c0_146, %c0_147] : memref<2x4x2x128xf32, #tpu.memory_space<vmem>>, vector<1x1x2x128xf32>
    %83 = vector.shape_cast %82 : vector<1x1x2x128xf32> to vector<2x128xf32>
    %84 = vector.broadcast %0 : f32 to vector<2x128xf32>
    %85 = arith.mulf %77, %84 : vector<2x128xf32>
    %86 = vector.broadcast %1 : f32 to vector<2x128xf32>
    %87 = arith.mulf %79, %86 : vector<2x128xf32>
    %88 = arith.addf %85, %87 : vector<2x128xf32>
    %89 = vector.broadcast %2 : f32 to vector<2x128xf32>
    %90 = arith.mulf %81, %89 : vector<2x128xf32>
    %91 = arith.addf %88, %90 : vector<2x128xf32>
    %92 = vector.broadcast %3 : f32 to vector<2x128xf32>
    %93 = arith.mulf %83, %92 : vector<2x128xf32>
    %94 = arith.addf %91, %93 : vector<2x128xf32>
    %95 = vector.broadcast %32 : f32 to vector<2x128xf32>
    %96 = arith.addf %94, %95 : vector<2x128xf32>
    %cst = arith.constant 0.000000e+00 : f32
    %97 = vector.broadcast %cst : f32 to vector<2x128xf32>
    %98 = arith.maximumf %96, %97 : vector<2x128xf32>
    %99 = vector.broadcast %4 : f32 to vector<2x128xf32>
    %100 = arith.mulf %77, %99 : vector<2x128xf32>
    %101 = vector.broadcast %5 : f32 to vector<2x128xf32>
    %102 = arith.mulf %79, %101 : vector<2x128xf32>
    %103 = arith.addf %100, %102 : vector<2x128xf32>
    %104 = vector.broadcast %6 : f32 to vector<2x128xf32>
    %105 = arith.mulf %81, %104 : vector<2x128xf32>
    %106 = arith.addf %103, %105 : vector<2x128xf32>
    %107 = vector.broadcast %7 : f32 to vector<2x128xf32>
    %108 = arith.mulf %83, %107 : vector<2x128xf32>
    %109 = arith.addf %106, %108 : vector<2x128xf32>
    %110 = vector.broadcast %33 : f32 to vector<2x128xf32>
    %111 = arith.addf %109, %110 : vector<2x128xf32>
    %cst_148 = arith.constant 0.000000e+00 : f32
    %112 = vector.broadcast %cst_148 : f32 to vector<2x128xf32>
    %113 = arith.maximumf %111, %112 : vector<2x128xf32>
    %114 = vector.broadcast %8 : f32 to vector<2x128xf32>
    %115 = arith.mulf %77, %114 : vector<2x128xf32>
    %116 = vector.broadcast %9 : f32 to vector<2x128xf32>
    %117 = arith.mulf %79, %116 : vector<2x128xf32>
    %118 = arith.addf %115, %117 : vector<2x128xf32>
    %119 = vector.broadcast %10 : f32 to vector<2x128xf32>
    %120 = arith.mulf %81, %119 : vector<2x128xf32>
    %121 = arith.addf %118, %120 : vector<2x128xf32>
    %122 = vector.broadcast %11 : f32 to vector<2x128xf32>
    %123 = arith.mulf %83, %122 : vector<2x128xf32>
    %124 = arith.addf %121, %123 : vector<2x128xf32>
    %125 = vector.broadcast %34 : f32 to vector<2x128xf32>
    %126 = arith.addf %124, %125 : vector<2x128xf32>
    %cst_149 = arith.constant 0.000000e+00 : f32
    %127 = vector.broadcast %cst_149 : f32 to vector<2x128xf32>
    %128 = arith.maximumf %126, %127 : vector<2x128xf32>
    %129 = vector.broadcast %12 : f32 to vector<2x128xf32>
    %130 = arith.mulf %77, %129 : vector<2x128xf32>
    %131 = vector.broadcast %13 : f32 to vector<2x128xf32>
    %132 = arith.mulf %79, %131 : vector<2x128xf32>
    %133 = arith.addf %130, %132 : vector<2x128xf32>
    %134 = vector.broadcast %14 : f32 to vector<2x128xf32>
    %135 = arith.mulf %81, %134 : vector<2x128xf32>
    %136 = arith.addf %133, %135 : vector<2x128xf32>
    %137 = vector.broadcast %15 : f32 to vector<2x128xf32>
    %138 = arith.mulf %83, %137 : vector<2x128xf32>
    %139 = arith.addf %136, %138 : vector<2x128xf32>
    %140 = vector.broadcast %35 : f32 to vector<2x128xf32>
    %141 = arith.addf %139, %140 : vector<2x128xf32>
    %cst_150 = arith.constant 0.000000e+00 : f32
    %142 = vector.broadcast %cst_150 : f32 to vector<2x128xf32>
    %143 = arith.maximumf %141, %142 : vector<2x128xf32>
    %144 = vector.broadcast %16 : f32 to vector<2x128xf32>
    %145 = arith.mulf %77, %144 : vector<2x128xf32>
    %146 = vector.broadcast %17 : f32 to vector<2x128xf32>
    %147 = arith.mulf %79, %146 : vector<2x128xf32>
    %148 = arith.addf %145, %147 : vector<2x128xf32>
    %149 = vector.broadcast %18 : f32 to vector<2x128xf32>
    %150 = arith.mulf %81, %149 : vector<2x128xf32>
    %151 = arith.addf %148, %150 : vector<2x128xf32>
    %152 = vector.broadcast %19 : f32 to vector<2x128xf32>
    %153 = arith.mulf %83, %152 : vector<2x128xf32>
    %154 = arith.addf %151, %153 : vector<2x128xf32>
    %155 = vector.broadcast %36 : f32 to vector<2x128xf32>
    %156 = arith.addf %154, %155 : vector<2x128xf32>
    %cst_151 = arith.constant 0.000000e+00 : f32
    %157 = vector.broadcast %cst_151 : f32 to vector<2x128xf32>
    %158 = arith.maximumf %156, %157 : vector<2x128xf32>
    %159 = vector.broadcast %20 : f32 to vector<2x128xf32>
    %160 = arith.mulf %77, %159 : vector<2x128xf32>
    %161 = vector.broadcast %21 : f32 to vector<2x128xf32>
    %162 = arith.mulf %79, %161 : vector<2x128xf32>
    %163 = arith.addf %160, %162 : vector<2x128xf32>
    %164 = vector.broadcast %22 : f32 to vector<2x128xf32>
    %165 = arith.mulf %81, %164 : vector<2x128xf32>
    %166 = arith.addf %163, %165 : vector<2x128xf32>
    %167 = vector.broadcast %23 : f32 to vector<2x128xf32>
    %168 = arith.mulf %83, %167 : vector<2x128xf32>
    %169 = arith.addf %166, %168 : vector<2x128xf32>
    %170 = vector.broadcast %37 : f32 to vector<2x128xf32>
    %171 = arith.addf %169, %170 : vector<2x128xf32>
    %cst_152 = arith.constant 0.000000e+00 : f32
    %172 = vector.broadcast %cst_152 : f32 to vector<2x128xf32>
    %173 = arith.maximumf %171, %172 : vector<2x128xf32>
    %174 = vector.broadcast %24 : f32 to vector<2x128xf32>
    %175 = arith.mulf %77, %174 : vector<2x128xf32>
    %176 = vector.broadcast %25 : f32 to vector<2x128xf32>
    %177 = arith.mulf %79, %176 : vector<2x128xf32>
    %178 = arith.addf %175, %177 : vector<2x128xf32>
    %179 = vector.broadcast %26 : f32 to vector<2x128xf32>
    %180 = arith.mulf %81, %179 : vector<2x128xf32>
    %181 = arith.addf %178, %180 : vector<2x128xf32>
    %182 = vector.broadcast %27 : f32 to vector<2x128xf32>
    %183 = arith.mulf %83, %182 : vector<2x128xf32>
    %184 = arith.addf %181, %183 : vector<2x128xf32>
    %185 = vector.broadcast %38 : f32 to vector<2x128xf32>
    %186 = arith.addf %184, %185 : vector<2x128xf32>
    %cst_153 = arith.constant 0.000000e+00 : f32
    %187 = vector.broadcast %cst_153 : f32 to vector<2x128xf32>
    %188 = arith.maximumf %186, %187 : vector<2x128xf32>
    %189 = vector.broadcast %28 : f32 to vector<2x128xf32>
    %190 = arith.mulf %77, %189 : vector<2x128xf32>
    %191 = vector.broadcast %29 : f32 to vector<2x128xf32>
    %192 = arith.mulf %79, %191 : vector<2x128xf32>
    %193 = arith.addf %190, %192 : vector<2x128xf32>
    %194 = vector.broadcast %30 : f32 to vector<2x128xf32>
    %195 = arith.mulf %81, %194 : vector<2x128xf32>
    %196 = arith.addf %193, %195 : vector<2x128xf32>
    %197 = vector.broadcast %31 : f32 to vector<2x128xf32>
    %198 = arith.mulf %83, %197 : vector<2x128xf32>
    %199 = arith.addf %196, %198 : vector<2x128xf32>
    %200 = vector.broadcast %39 : f32 to vector<2x128xf32>
    %201 = arith.addf %199, %200 : vector<2x128xf32>
    %cst_154 = arith.constant 0.000000e+00 : f32
    %202 = vector.broadcast %cst_154 : f32 to vector<2x128xf32>
    %203 = arith.maximumf %201, %202 : vector<2x128xf32>
    %204 = vector.broadcast %40 : f32 to vector<2x128xf32>
    %205 = arith.mulf %98, %204 : vector<2x128xf32>
    %206 = vector.broadcast %41 : f32 to vector<2x128xf32>
    %207 = arith.mulf %113, %206 : vector<2x128xf32>
    %208 = arith.addf %205, %207 : vector<2x128xf32>
    %209 = vector.broadcast %42 : f32 to vector<2x128xf32>
    %210 = arith.mulf %128, %209 : vector<2x128xf32>
    %211 = arith.addf %208, %210 : vector<2x128xf32>
    %212 = vector.broadcast %43 : f32 to vector<2x128xf32>
    %213 = arith.mulf %143, %212 : vector<2x128xf32>
    %214 = arith.addf %211, %213 : vector<2x128xf32>
    %215 = vector.broadcast %44 : f32 to vector<2x128xf32>
    %216 = arith.mulf %158, %215 : vector<2x128xf32>
    %217 = arith.addf %214, %216 : vector<2x128xf32>
    %218 = vector.broadcast %45 : f32 to vector<2x128xf32>
    %219 = arith.mulf %173, %218 : vector<2x128xf32>
    %220 = arith.addf %217, %219 : vector<2x128xf32>
    %221 = vector.broadcast %46 : f32 to vector<2x128xf32>
    %222 = arith.mulf %188, %221 : vector<2x128xf32>
    %223 = arith.addf %220, %222 : vector<2x128xf32>
    %224 = vector.broadcast %47 : f32 to vector<2x128xf32>
    %225 = arith.mulf %203, %224 : vector<2x128xf32>
    %226 = arith.addf %223, %225 : vector<2x128xf32>
    %227 = vector.broadcast %72 : f32 to vector<2x128xf32>
    %228 = arith.addf %226, %227 : vector<2x128xf32>
    %229 = arith.addf %228, %77 : vector<2x128xf32>
    %cst_155 = arith.constant 0.000000e+00 : f32
    %230 = vector.broadcast %cst_155 : f32 to vector<2x128xf32>
    %231 = arith.maximumf %229, %230 : vector<2x128xf32>
    %c0_156 = arith.constant 0 : index
    %c0_157 = arith.constant 0 : index
    %c0_158 = arith.constant 0 : index
    %c0_159 = arith.constant 0 : index
    %232 = vector.load %arg7[%c0_156, %c0_157, %c0_158, %c0_159] : memref<2x4x2x128xf32, #tpu.memory_space<vmem>>, vector<1x1x2x128xf32>
    %233 = vector.shape_cast %232 : vector<1x1x2x128xf32> to vector<2x128xf32>
    %234 = vector.shape_cast %231 : vector<2x128xf32> to vector<1x1x2x128xf32>
    tpu.vector_store %arg7[%c0_156, %c0_157, %c0_158, %c0_159], %234 {strides = array<i32>} : memref<2x4x2x128xf32, #tpu.memory_space<vmem>>, vector<1x1x2x128xf32>,
    %235 = vector.broadcast %48 : f32 to vector<2x128xf32>
    %236 = arith.mulf %98, %235 : vector<2x128xf32>
    %237 = vector.broadcast %49 : f32 to vector<2x128xf32>
    %238 = arith.mulf %113, %237 : vector<2x128xf32>
    %239 = arith.addf %236, %238 : vector<2x128xf32>
    %240 = vector.broadcast %50 : f32 to vector<2x128xf32>
    %241 = arith.mulf %128, %240 : vector<2x128xf32>
    %242 = arith.addf %239, %241 : vector<2x128xf32>
    %243 = vector.broadcast %51 : f32 to vector<2x128xf32>
    %244 = arith.mulf %143, %243 : vector<2x128xf32>
    %245 = arith.addf %242, %244 : vector<2x128xf32>
    %246 = vector.broadcast %52 : f32 to vector<2x128xf32>
    %247 = arith.mulf %158, %246 : vector<2x128xf32>
    %248 = arith.addf %245, %247 : vector<2x128xf32>
    %249 = vector.broadcast %53 : f32 to vector<2x128xf32>
    %250 = arith.mulf %173, %249 : vector<2x128xf32>
    %251 = arith.addf %248, %250 : vector<2x128xf32>
    %252 = vector.broadcast %54 : f32 to vector<2x128xf32>
    %253 = arith.mulf %188, %252 : vector<2x128xf32>
    %254 = arith.addf %251, %253 : vector<2x128xf32>
    %255 = vector.broadcast %55 : f32 to vector<2x128xf32>
    %256 = arith.mulf %203, %255 : vector<2x128xf32>
    %257 = arith.addf %254, %256 : vector<2x128xf32>
    %258 = vector.broadcast %73 : f32 to vector<2x128xf32>
    %259 = arith.addf %257, %258 : vector<2x128xf32>
    %260 = arith.addf %259, %79 : vector<2x128xf32>
    %cst_160 = arith.constant 0.000000e+00 : f32
    %261 = vector.broadcast %cst_160 : f32 to vector<2x128xf32>
    %262 = arith.maximumf %260, %261 : vector<2x128xf32>
    %c0_161 = arith.constant 0 : index
    %c1_162 = arith.constant 1 : index
    %c0_163 = arith.constant 0 : index
    %c0_164 = arith.constant 0 : index
    %263 = vector.load %arg7[%c0_161, %c1_162, %c0_163, %c0_164] : memref<2x4x2x128xf32, #tpu.memory_space<vmem>>, vector<1x1x2x128xf32>
    %264 = vector.shape_cast %263 : vector<1x1x2x128xf32> to vector<2x128xf32>
    %265 = vector.shape_cast %262 : vector<2x128xf32> to vector<1x1x2x128xf32>
    tpu.vector_store %arg7[%c0_161, %c1_162, %c0_163, %c0_164], %265 {strides = array<i32>} : memref<2x4x2x128xf32, #tpu.memory_space<vmem>>, vector<1x1x2x128xf32>,
    %266 = vector.broadcast %56 : f32 to vector<2x128xf32>
    %267 = arith.mulf %98, %266 : vector<2x128xf32>
    %268 = vector.broadcast %57 : f32 to vector<2x128xf32>
    %269 = arith.mulf %113, %268 : vector<2x128xf32>
    %270 = arith.addf %267, %269 : vector<2x128xf32>
    %271 = vector.broadcast %58 : f32 to vector<2x128xf32>
    %272 = arith.mulf %128, %271 : vector<2x128xf32>
    %273 = arith.addf %270, %272 : vector<2x128xf32>
    %274 = vector.broadcast %59 : f32 to vector<2x128xf32>
    %275 = arith.mulf %143, %274 : vector<2x128xf32>
    %276 = arith.addf %273, %275 : vector<2x128xf32>
    %277 = vector.broadcast %60 : f32 to vector<2x128xf32>
    %278 = arith.mulf %158, %277 : vector<2x128xf32>
    %279 = arith.addf %276, %278 : vector<2x128xf32>
    %280 = vector.broadcast %61 : f32 to vector<2x128xf32>
    %281 = arith.mulf %173, %280 : vector<2x128xf32>
    %282 = arith.addf %279, %281 : vector<2x128xf32>
    %283 = vector.broadcast %62 : f32 to vector<2x128xf32>
    %284 = arith.mulf %188, %283 : vector<2x128xf32>
    %285 = arith.addf %282, %284 : vector<2x128xf32>
    %286 = vector.broadcast %63 : f32 to vector<2x128xf32>
    %287 = arith.mulf %203, %286 : vector<2x128xf32>
    %288 = arith.addf %285, %287 : vector<2x128xf32>
    %289 = vector.broadcast %74 : f32 to vector<2x128xf32>
    %290 = arith.addf %288, %289 : vector<2x128xf32>
    %291 = arith.addf %290, %81 : vector<2x128xf32>
    %cst_165 = arith.constant 0.000000e+00 : f32
    %292 = vector.broadcast %cst_165 : f32 to vector<2x128xf32>
    %293 = arith.maximumf %291, %292 : vector<2x128xf32>
    %c0_166 = arith.constant 0 : index
    %c2_167 = arith.constant 2 : index
    %c0_168 = arith.constant 0 : index
    %c0_169 = arith.constant 0 : index
    %294 = vector.load %arg7[%c0_166, %c2_167, %c0_168, %c0_169] : memref<2x4x2x128xf32, #tpu.memory_space<vmem>>, vector<1x1x2x128xf32>
    %295 = vector.shape_cast %294 : vector<1x1x2x128xf32> to vector<2x128xf32>
    %296 = vector.shape_cast %293 : vector<2x128xf32> to vector<1x1x2x128xf32>
    tpu.vector_store %arg7[%c0_166, %c2_167, %c0_168, %c0_169], %296 {strides = array<i32>} : memref<2x4x2x128xf32, #tpu.memory_space<vmem>>, vector<1x1x2x128xf32>,
    %297 = vector.broadcast %64 : f32 to vector<2x128xf32>
    %298 = arith.mulf %98, %297 : vector<2x128xf32>
    %299 = vector.broadcast %65 : f32 to vector<2x128xf32>
    %300 = arith.mulf %113, %299 : vector<2x128xf32>
    %301 = arith.addf %298, %300 : vector<2x128xf32>
    %302 = vector.broadcast %66 : f32 to vector<2x128xf32>
    %303 = arith.mulf %128, %302 : vector<2x128xf32>
    %304 = arith.addf %301, %303 : vector<2x128xf32>
    %305 = vector.broadcast %67 : f32 to vector<2x128xf32>
    %306 = arith.mulf %143, %305 : vector<2x128xf32>
    %307 = arith.addf %304, %306 : vector<2x128xf32>
    %308 = vector.broadcast %68 : f32 to vector<2x128xf32>
    %309 = arith.mulf %158, %308 : vector<2x128xf32>
    %310 = arith.addf %307, %309 : vector<2x128xf32>
    %311 = vector.broadcast %69 : f32 to vector<2x128xf32>
    %312 = arith.mulf %173, %311 : vector<2x128xf32>
    %313 = arith.addf %310, %312 : vector<2x128xf32>
    %314 = vector.broadcast %70 : f32 to vector<2x128xf32>
    %315 = arith.mulf %188, %314 : vector<2x128xf32>
    %316 = arith.addf %313, %315 : vector<2x128xf32>
    %317 = vector.broadcast %71 : f32 to vector<2x128xf32>
    %318 = arith.mulf %203, %317 : vector<2x128xf32>
    %319 = arith.addf %316, %318 : vector<2x128xf32>
    %320 = vector.broadcast %75 : f32 to vector<2x128xf32>
    %321 = arith.addf %319, %320 : vector<2x128xf32>
    %322 = arith.addf %321, %83 : vector<2x128xf32>
    %cst_170 = arith.constant 0.000000e+00 : f32
    %323 = vector.broadcast %cst_170 : f32 to vector<2x128xf32>
    %324 = arith.maximumf %322, %323 : vector<2x128xf32>
    %c0_171 = arith.constant 0 : index
    %c3_172 = arith.constant 3 : index
    %c0_173 = arith.constant 0 : index
    %c0_174 = arith.constant 0 : index
    %325 = vector.load %arg7[%c0_171, %c3_172, %c0_173, %c0_174] : memref<2x4x2x128xf32, #tpu.memory_space<vmem>>, vector<1x1x2x128xf32>
    %326 = vector.shape_cast %325 : vector<1x1x2x128xf32> to vector<2x128xf32>
    %327 = vector.shape_cast %324 : vector<2x128xf32> to vector<1x1x2x128xf32>
    tpu.vector_store %arg7[%c0_171, %c3_172, %c0_173, %c0_174], %327 {strides = array<i32>} : memref<2x4x2x128xf32, #tpu.memory_space<vmem>>, vector<1x1x2x128xf32>,
    %c1_175 = arith.constant 1 : index
    %c0_176 = arith.constant 0 : index
    %c0_177 = arith.constant 0 : index
    %c0_178 = arith.constant 0 : index
    %328 = vector.load %arg2[%c1_175, %c0_176, %c0_177, %c0_178] : memref<2x4x2x128xf32, #tpu.memory_space<vmem>>, vector<1x1x2x128xf32>
    %329 = vector.shape_cast %328 : vector<1x1x2x128xf32> to vector<2x128xf32>
    %c1_179 = arith.constant 1 : index
    %c1_180 = arith.constant 1 : index
    %c0_181 = arith.constant 0 : index
    %c0_182 = arith.constant 0 : index
    %330 = vector.load %arg2[%c1_179, %c1_180, %c0_181, %c0_182] : memref<2x4x2x128xf32, #tpu.memory_space<vmem>>, vector<1x1x2x128xf32>
    %331 = vector.shape_cast %330 : vector<1x1x2x128xf32> to vector<2x128xf32>
    %c1_183 = arith.constant 1 : index
    %c2_184 = arith.constant 2 : index
    %c0_185 = arith.constant 0 : index
    %c0_186 = arith.constant 0 : index
    %332 = vector.load %arg2[%c1_183, %c2_184, %c0_185, %c0_186] : memref<2x4x2x128xf32, #tpu.memory_space<vmem>>, vector<1x1x2x128xf32>
    %333 = vector.shape_cast %332 : vector<1x1x2x128xf32> to vector<2x128xf32>
    %c1_187 = arith.constant 1 : index
    %c3_188 = arith.constant 3 : index
    %c0_189 = arith.constant 0 : index
    %c0_190 = arith.constant 0 : index
    %334 = vector.load %arg2[%c1_187, %c3_188, %c0_189, %c0_190] : memref<2x4x2x128xf32, #tpu.memory_space<vmem>>, vector<1x1x2x128xf32>
    %335 = vector.shape_cast %334 : vector<1x1x2x128xf32> to vector<2x128xf32>
    %336 = vector.broadcast %0 : f32 to vector<2x128xf32>
    %337 = arith.mulf %329, %336 : vector<2x128xf32>
    %338 = vector.broadcast %1 : f32 to vector<2x128xf32>
    %339 = arith.mulf %331, %338 : vector<2x128xf32>
    %340 = arith.addf %337, %339 : vector<2x128xf32>
    %341 = vector.broadcast %2 : f32 to vector<2x128xf32>
    %342 = arith.mulf %333, %341 : vector<2x128xf32>
    %343 = arith.addf %340, %342 : vector<2x128xf32>
    %344 = vector.broadcast %3 : f32 to vector<2x128xf32>
    %345 = arith.mulf %335, %344 : vector<2x128xf32>
    %346 = arith.addf %343, %345 : vector<2x128xf32>
    %347 = vector.broadcast %32 : f32 to vector<2x128xf32>
    %348 = arith.addf %346, %347 : vector<2x128xf32>
    %cst_191 = arith.constant 0.000000e+00 : f32
    %349 = vector.broadcast %cst_191 : f32 to vector<2x128xf32>
    %350 = arith.maximumf %348, %349 : vector<2x128xf32>
    %351 = vector.broadcast %4 : f32 to vector<2x128xf32>
    %352 = arith.mulf %329, %351 : vector<2x128xf32>
    %353 = vector.broadcast %5 : f32 to vector<2x128xf32>
    %354 = arith.mulf %331, %353 : vector<2x128xf32>
    %355 = arith.addf %352, %354 : vector<2x128xf32>
    %356 = vector.broadcast %6 : f32 to vector<2x128xf32>
    %357 = arith.mulf %333, %356 : vector<2x128xf32>
    %358 = arith.addf %355, %357 : vector<2x128xf32>
    %359 = vector.broadcast %7 : f32 to vector<2x128xf32>
    %360 = arith.mulf %335, %359 : vector<2x128xf32>
    %361 = arith.addf %358, %360 : vector<2x128xf32>
    %362 = vector.broadcast %33 : f32 to vector<2x128xf32>
    %363 = arith.addf %361, %362 : vector<2x128xf32>
    %cst_192 = arith.constant 0.000000e+00 : f32
    %364 = vector.broadcast %cst_192 : f32 to vector<2x128xf32>
    %365 = arith.maximumf %363, %364 : vector<2x128xf32>
    %366 = vector.broadcast %8 : f32 to vector<2x128xf32>
    %367 = arith.mulf %329, %366 : vector<2x128xf32>
    %368 = vector.broadcast %9 : f32 to vector<2x128xf32>
    %369 = arith.mulf %331, %368 : vector<2x128xf32>
    %370 = arith.addf %367, %369 : vector<2x128xf32>
    %371 = vector.broadcast %10 : f32 to vector<2x128xf32>
    %372 = arith.mulf %333, %371 : vector<2x128xf32>
    %373 = arith.addf %370, %372 : vector<2x128xf32>
    %374 = vector.broadcast %11 : f32 to vector<2x128xf32>
    %375 = arith.mulf %335, %374 : vector<2x128xf32>
    %376 = arith.addf %373, %375 : vector<2x128xf32>
    %377 = vector.broadcast %34 : f32 to vector<2x128xf32>
    %378 = arith.addf %376, %377 : vector<2x128xf32>
    %cst_193 = arith.constant 0.000000e+00 : f32
    %379 = vector.broadcast %cst_193 : f32 to vector<2x128xf32>
    %380 = arith.maximumf %378, %379 : vector<2x128xf32>
    %381 = vector.broadcast %12 : f32 to vector<2x128xf32>
    %382 = arith.mulf %329, %381 : vector<2x128xf32>
    %383 = vector.broadcast %13 : f32 to vector<2x128xf32>
    %384 = arith.mulf %331, %383 : vector<2x128xf32>
    %385 = arith.addf %382, %384 : vector<2x128xf32>
    %386 = vector.broadcast %14 : f32 to vector<2x128xf32>
    %387 = arith.mulf %333, %386 : vector<2x128xf32>
    %388 = arith.addf %385, %387 : vector<2x128xf32>
    %389 = vector.broadcast %15 : f32 to vector<2x128xf32>
    %390 = arith.mulf %335, %389 : vector<2x128xf32>
    %391 = arith.addf %388, %390 : vector<2x128xf32>
    %392 = vector.broadcast %35 : f32 to vector<2x128xf32>
    %393 = arith.addf %391, %392 : vector<2x128xf32>
    %cst_194 = arith.constant 0.000000e+00 : f32
    %394 = vector.broadcast %cst_194 : f32 to vector<2x128xf32>
    %395 = arith.maximumf %393, %394 : vector<2x128xf32>
    %396 = vector.broadcast %16 : f32 to vector<2x128xf32>
    %397 = arith.mulf %329, %396 : vector<2x128xf32>
    %398 = vector.broadcast %17 : f32 to vector<2x128xf32>
    %399 = arith.mulf %331, %398 : vector<2x128xf32>
    %400 = arith.addf %397, %399 : vector<2x128xf32>
    %401 = vector.broadcast %18 : f32 to vector<2x128xf32>
    %402 = arith.mulf %333, %401 : vector<2x128xf32>
    %403 = arith.addf %400, %402 : vector<2x128xf32>
    %404 = vector.broadcast %19 : f32 to vector<2x128xf32>
    %405 = arith.mulf %335, %404 : vector<2x128xf32>
    %406 = arith.addf %403, %405 : vector<2x128xf32>
    %407 = vector.broadcast %36 : f32 to vector<2x128xf32>
    %408 = arith.addf %406, %407 : vector<2x128xf32>
    %cst_195 = arith.constant 0.000000e+00 : f32
    %409 = vector.broadcast %cst_195 : f32 to vector<2x128xf32>
    %410 = arith.maximumf %408, %409 : vector<2x128xf32>
    %411 = vector.broadcast %20 : f32 to vector<2x128xf32>
    %412 = arith.mulf %329, %411 : vector<2x128xf32>
    %413 = vector.broadcast %21 : f32 to vector<2x128xf32>
    %414 = arith.mulf %331, %413 : vector<2x128xf32>
    %415 = arith.addf %412, %414 : vector<2x128xf32>
    %416 = vector.broadcast %22 : f32 to vector<2x128xf32>
    %417 = arith.mulf %333, %416 : vector<2x128xf32>
    %418 = arith.addf %415, %417 : vector<2x128xf32>
    %419 = vector.broadcast %23 : f32 to vector<2x128xf32>
    %420 = arith.mulf %335, %419 : vector<2x128xf32>
    %421 = arith.addf %418, %420 : vector<2x128xf32>
    %422 = vector.broadcast %37 : f32 to vector<2x128xf32>
    %423 = arith.addf %421, %422 : vector<2x128xf32>
    %cst_196 = arith.constant 0.000000e+00 : f32
    %424 = vector.broadcast %cst_196 : f32 to vector<2x128xf32>
    %425 = arith.maximumf %423, %424 : vector<2x128xf32>
    %426 = vector.broadcast %24 : f32 to vector<2x128xf32>
    %427 = arith.mulf %329, %426 : vector<2x128xf32>
    %428 = vector.broadcast %25 : f32 to vector<2x128xf32>
    %429 = arith.mulf %331, %428 : vector<2x128xf32>
    %430 = arith.addf %427, %429 : vector<2x128xf32>
    %431 = vector.broadcast %26 : f32 to vector<2x128xf32>
    %432 = arith.mulf %333, %431 : vector<2x128xf32>
    %433 = arith.addf %430, %432 : vector<2x128xf32>
    %434 = vector.broadcast %27 : f32 to vector<2x128xf32>
    %435 = arith.mulf %335, %434 : vector<2x128xf32>
    %436 = arith.addf %433, %435 : vector<2x128xf32>
    %437 = vector.broadcast %38 : f32 to vector<2x128xf32>
    %438 = arith.addf %436, %437 : vector<2x128xf32>
    %cst_197 = arith.constant 0.000000e+00 : f32
    %439 = vector.broadcast %cst_197 : f32 to vector<2x128xf32>
    %440 = arith.maximumf %438, %439 : vector<2x128xf32>
    %441 = vector.broadcast %28 : f32 to vector<2x128xf32>
    %442 = arith.mulf %329, %441 : vector<2x128xf32>
    %443 = vector.broadcast %29 : f32 to vector<2x128xf32>
    %444 = arith.mulf %331, %443 : vector<2x128xf32>
    %445 = arith.addf %442, %444 : vector<2x128xf32>
    %446 = vector.broadcast %30 : f32 to vector<2x128xf32>
    %447 = arith.mulf %333, %446 : vector<2x128xf32>
    %448 = arith.addf %445, %447 : vector<2x128xf32>
    %449 = vector.broadcast %31 : f32 to vector<2x128xf32>
    %450 = arith.mulf %335, %449 : vector<2x128xf32>
    %451 = arith.addf %448, %450 : vector<2x128xf32>
    %452 = vector.broadcast %39 : f32 to vector<2x128xf32>
    %453 = arith.addf %451, %452 : vector<2x128xf32>
    %cst_198 = arith.constant 0.000000e+00 : f32
    %454 = vector.broadcast %cst_198 : f32 to vector<2x128xf32>
    %455 = arith.maximumf %453, %454 : vector<2x128xf32>
    %456 = vector.broadcast %40 : f32 to vector<2x128xf32>
    %457 = arith.mulf %350, %456 : vector<2x128xf32>
    %458 = vector.broadcast %41 : f32 to vector<2x128xf32>
    %459 = arith.mulf %365, %458 : vector<2x128xf32>
    %460 = arith.addf %457, %459 : vector<2x128xf32>
    %461 = vector.broadcast %42 : f32 to vector<2x128xf32>
    %462 = arith.mulf %380, %461 : vector<2x128xf32>
    %463 = arith.addf %460, %462 : vector<2x128xf32>
    %464 = vector.broadcast %43 : f32 to vector<2x128xf32>
    %465 = arith.mulf %395, %464 : vector<2x128xf32>
    %466 = arith.addf %463, %465 : vector<2x128xf32>
    %467 = vector.broadcast %44 : f32 to vector<2x128xf32>
    %468 = arith.mulf %410, %467 : vector<2x128xf32>
    %469 = arith.addf %466, %468 : vector<2x128xf32>
    %470 = vector.broadcast %45 : f32 to vector<2x128xf32>
    %471 = arith.mulf %425, %470 : vector<2x128xf32>
    %472 = arith.addf %469, %471 : vector<2x128xf32>
    %473 = vector.broadcast %46 : f32 to vector<2x128xf32>
    %474 = arith.mulf %440, %473 : vector<2x128xf32>
    %475 = arith.addf %472, %474 : vector<2x128xf32>
    %476 = vector.broadcast %47 : f32 to vector<2x128xf32>
    %477 = arith.mulf %455, %476 : vector<2x128xf32>
    %478 = arith.addf %475, %477 : vector<2x128xf32>
    %479 = vector.broadcast %72 : f32 to vector<2x128xf32>
    %480 = arith.addf %478, %479 : vector<2x128xf32>
    %481 = arith.addf %480, %329 : vector<2x128xf32>
    %cst_199 = arith.constant 0.000000e+00 : f32
    %482 = vector.broadcast %cst_199 : f32 to vector<2x128xf32>
    %483 = arith.maximumf %481, %482 : vector<2x128xf32>
    %c1_200 = arith.constant 1 : index
    %c0_201 = arith.constant 0 : index
    %c0_202 = arith.constant 0 : index
    %c0_203 = arith.constant 0 : index
    %484 = vector.load %arg7[%c1_200, %c0_201, %c0_202, %c0_203] : memref<2x4x2x128xf32, #tpu.memory_space<vmem>>, vector<1x1x2x128xf32>
    %485 = vector.shape_cast %484 : vector<1x1x2x128xf32> to vector<2x128xf32>
    %486 = vector.shape_cast %483 : vector<2x128xf32> to vector<1x1x2x128xf32>
    tpu.vector_store %arg7[%c1_200, %c0_201, %c0_202, %c0_203], %486 {strides = array<i32>} : memref<2x4x2x128xf32, #tpu.memory_space<vmem>>, vector<1x1x2x128xf32>,
    %487 = vector.broadcast %48 : f32 to vector<2x128xf32>
    %488 = arith.mulf %350, %487 : vector<2x128xf32>
    %489 = vector.broadcast %49 : f32 to vector<2x128xf32>
    %490 = arith.mulf %365, %489 : vector<2x128xf32>
    %491 = arith.addf %488, %490 : vector<2x128xf32>
    %492 = vector.broadcast %50 : f32 to vector<2x128xf32>
    %493 = arith.mulf %380, %492 : vector<2x128xf32>
    %494 = arith.addf %491, %493 : vector<2x128xf32>
    %495 = vector.broadcast %51 : f32 to vector<2x128xf32>
    %496 = arith.mulf %395, %495 : vector<2x128xf32>
    %497 = arith.addf %494, %496 : vector<2x128xf32>
    %498 = vector.broadcast %52 : f32 to vector<2x128xf32>
    %499 = arith.mulf %410, %498 : vector<2x128xf32>
    %500 = arith.addf %497, %499 : vector<2x128xf32>
    %501 = vector.broadcast %53 : f32 to vector<2x128xf32>
    %502 = arith.mulf %425, %501 : vector<2x128xf32>
    %503 = arith.addf %500, %502 : vector<2x128xf32>
    %504 = vector.broadcast %54 : f32 to vector<2x128xf32>
    %505 = arith.mulf %440, %504 : vector<2x128xf32>
    %506 = arith.addf %503, %505 : vector<2x128xf32>
    %507 = vector.broadcast %55 : f32 to vector<2x128xf32>
    %508 = arith.mulf %455, %507 : vector<2x128xf32>
    %509 = arith.addf %506, %508 : vector<2x128xf32>
    %510 = vector.broadcast %73 : f32 to vector<2x128xf32>
    %511 = arith.addf %509, %510 : vector<2x128xf32>
    %512 = arith.addf %511, %331 : vector<2x128xf32>
    %cst_204 = arith.constant 0.000000e+00 : f32
    %513 = vector.broadcast %cst_204 : f32 to vector<2x128xf32>
    %514 = arith.maximumf %512, %513 : vector<2x128xf32>
    %c1_205 = arith.constant 1 : index
    %c1_206 = arith.constant 1 : index
    %c0_207 = arith.constant 0 : index
    %c0_208 = arith.constant 0 : index
    %515 = vector.load %arg7[%c1_205, %c1_206, %c0_207, %c0_208] : memref<2x4x2x128xf32, #tpu.memory_space<vmem>>, vector<1x1x2x128xf32>
    %516 = vector.shape_cast %515 : vector<1x1x2x128xf32> to vector<2x128xf32>
    %517 = vector.shape_cast %514 : vector<2x128xf32> to vector<1x1x2x128xf32>
    tpu.vector_store %arg7[%c1_205, %c1_206, %c0_207, %c0_208], %517 {strides = array<i32>} : memref<2x4x2x128xf32, #tpu.memory_space<vmem>>, vector<1x1x2x128xf32>,
    %518 = vector.broadcast %56 : f32 to vector<2x128xf32>
    %519 = arith.mulf %350, %518 : vector<2x128xf32>
    %520 = vector.broadcast %57 : f32 to vector<2x128xf32>
    %521 = arith.mulf %365, %520 : vector<2x128xf32>
    %522 = arith.addf %519, %521 : vector<2x128xf32>
    %523 = vector.broadcast %58 : f32 to vector<2x128xf32>
    %524 = arith.mulf %380, %523 : vector<2x128xf32>
    %525 = arith.addf %522, %524 : vector<2x128xf32>
    %526 = vector.broadcast %59 : f32 to vector<2x128xf32>
    %527 = arith.mulf %395, %526 : vector<2x128xf32>
    %528 = arith.addf %525, %527 : vector<2x128xf32>
    %529 = vector.broadcast %60 : f32 to vector<2x128xf32>
    %530 = arith.mulf %410, %529 : vector<2x128xf32>
    %531 = arith.addf %528, %530 : vector<2x128xf32>
    %532 = vector.broadcast %61 : f32 to vector<2x128xf32>
    %533 = arith.mulf %425, %532 : vector<2x128xf32>
    %534 = arith.addf %531, %533 : vector<2x128xf32>
    %535 = vector.broadcast %62 : f32 to vector<2x128xf32>
    %536 = arith.mulf %440, %535 : vector<2x128xf32>
    %537 = arith.addf %534, %536 : vector<2x128xf32>
    %538 = vector.broadcast %63 : f32 to vector<2x128xf32>
    %539 = arith.mulf %455, %538 : vector<2x128xf32>
    %540 = arith.addf %537, %539 : vector<2x128xf32>
    %541 = vector.broadcast %74 : f32 to vector<2x128xf32>
    %542 = arith.addf %540, %541 : vector<2x128xf32>
    %543 = arith.addf %542, %333 : vector<2x128xf32>
    %cst_209 = arith.constant 0.000000e+00 : f32
    %544 = vector.broadcast %cst_209 : f32 to vector<2x128xf32>
    %545 = arith.maximumf %543, %544 : vector<2x128xf32>
    %c1_210 = arith.constant 1 : index
    %c2_211 = arith.constant 2 : index
    %c0_212 = arith.constant 0 : index
    %c0_213 = arith.constant 0 : index
    %546 = vector.load %arg7[%c1_210, %c2_211, %c0_212, %c0_213] : memref<2x4x2x128xf32, #tpu.memory_space<vmem>>, vector<1x1x2x128xf32>
    %547 = vector.shape_cast %546 : vector<1x1x2x128xf32> to vector<2x128xf32>
    %548 = vector.shape_cast %545 : vector<2x128xf32> to vector<1x1x2x128xf32>
    tpu.vector_store %arg7[%c1_210, %c2_211, %c0_212, %c0_213], %548 {strides = array<i32>} : memref<2x4x2x128xf32, #tpu.memory_space<vmem>>, vector<1x1x2x128xf32>,
    %549 = vector.broadcast %64 : f32 to vector<2x128xf32>
    %550 = arith.mulf %350, %549 : vector<2x128xf32>
    %551 = vector.broadcast %65 : f32 to vector<2x128xf32>
    %552 = arith.mulf %365, %551 : vector<2x128xf32>
    %553 = arith.addf %550, %552 : vector<2x128xf32>
    %554 = vector.broadcast %66 : f32 to vector<2x128xf32>
    %555 = arith.mulf %380, %554 : vector<2x128xf32>
    %556 = arith.addf %553, %555 : vector<2x128xf32>
    %557 = vector.broadcast %67 : f32 to vector<2x128xf32>
    %558 = arith.mulf %395, %557 : vector<2x128xf32>
    %559 = arith.addf %556, %558 : vector<2x128xf32>
    %560 = vector.broadcast %68 : f32 to vector<2x128xf32>
    %561 = arith.mulf %410, %560 : vector<2x128xf32>
    %562 = arith.addf %559, %561 : vector<2x128xf32>
    %563 = vector.broadcast %69 : f32 to vector<2x128xf32>
    %564 = arith.mulf %425, %563 : vector<2x128xf32>
    %565 = arith.addf %562, %564 : vector<2x128xf32>
    %566 = vector.broadcast %70 : f32 to vector<2x128xf32>
    %567 = arith.mulf %440, %566 : vector<2x128xf32>
    %568 = arith.addf %565, %567 : vector<2x128xf32>
    %569 = vector.broadcast %71 : f32 to vector<2x128xf32>
    %570 = arith.mulf %455, %569 : vector<2x128xf32>
    %571 = arith.addf %568, %570 : vector<2x128xf32>
    %572 = vector.broadcast %75 : f32 to vector<2x128xf32>
    %573 = arith.addf %571, %572 : vector<2x128xf32>
    %574 = arith.addf %573, %335 : vector<2x128xf32>
    %cst_214 = arith.constant 0.000000e+00 : f32
    %575 = vector.broadcast %cst_214 : f32 to vector<2x128xf32>
    %576 = arith.maximumf %574, %575 : vector<2x128xf32>
    %c1_215 = arith.constant 1 : index
    %c3_216 = arith.constant 3 : index
    %c0_217 = arith.constant 0 : index
    %c0_218 = arith.constant 0 : index
    %577 = vector.load %arg7[%c1_215, %c3_216, %c0_217, %c0_218] : memref<2x4x2x128xf32, #tpu.memory_space<vmem>>, vector<1x1x2x128xf32>
    %578 = vector.shape_cast %577 : vector<1x1x2x128xf32> to vector<2x128xf32>
    %579 = vector.shape_cast %576 : vector<2x128xf32> to vector<1x1x2x128xf32>
    tpu.vector_store %arg7[%c1_215, %c3_216, %c0_217, %c0_218], %579 {strides = array<i32>} : memref<2x4x2x128xf32, #tpu.memory_space<vmem>>, vector<1x1x2x128xf32>,
    return
  }
  func.func @transform_0(%arg0: i32, %arg1: i32) -> (i32, i32, i32, i32) {
    %c0_i32 = arith.constant 0 : i32
    %c0_i32_0 = arith.constant 0 : i32
    %c0_i32_1 = arith.constant 0 : i32
    return %arg0, %c0_i32, %arg1, %c0_i32_0 : i32, i32, i32, i32
  }
  func.func @transform_1(%arg0: i32, %arg1: i32) -> (i32, i32) {
    %c0_i32 = arith.constant 0 : i32
    %c0_i32_0 = arith.constant 0 : i32
    %c0_i32_1 = arith.constant 0 : i32
    return %c0_i32, %c0_i32_0 : i32, i32
  }
  func.func @transform_2(%arg0: i32, %arg1: i32) -> i32 {
    %c0_i32 = arith.constant 0 : i32
    %c0_i32_0 = arith.constant 0 : i32
    return %c0_i32 : i32
  }
  func.func @transform_3(%arg0: i32, %arg1: i32) -> (i32, i32) {
    %c0_i32 = arith.constant 0 : i32
    %c0_i32_0 = arith.constant 0 : i32
    %c0_i32_1 = arith.constant 0 : i32
    return %c0_i32, %c0_i32_0 : i32, i32
  }
  func.func @transform_4(%arg0: i32, %arg1: i32) -> i32 {
    %c0_i32 = arith.constant 0 : i32
    %c0_i32_0 = arith.constant 0 : i32
    return %c0_i32 : i32
  }
  func.func @transform_5(%arg0: i32, %arg1: i32) -> (i32, i32, i32, i32) {
    %c0_i32 = arith.constant 0 : i32
    %c0_i32_0 = arith.constant 0 : i32
    %c0_i32_1 = arith.constant 0 : i32
    return %arg0, %c0_i32, %arg1, %c0_i32_0 : i32, i32, i32, i32
  }
}

</mosaic_0001>

<llo_original>
// kernel: tpu_custom_call.1
$region0: #{tpu_custom_call.1}
  #allocation0 [shape = 'u32[]', space=smem, size = 0x4, offset = 0x4, fixed_abs, tag = 'smem constant byte address 0x4 - core index']
  #allocation1 [shape = 'u32[72,128]{1,0:T(1,128)}', space=vmem, size = 0x9000, scoped, tag = 'internal scratch']
  %s0 = inlined_call_operand.hbm [shape: f32[2,4,2,128], index: 0, kind: input, shape index: {}]
  %s1 = inlined_call_operand.vmem [shape: f32[8,4], index: 1, kind: input, shape index: {}]
  %s2 = inlined_call_operand.vmem [shape: f32[8], index: 2, kind: input, shape index: {}]
  %s3 = inlined_call_operand.vmem [shape: f32[4,8], index: 3, kind: input, shape index: {}]
  %s4 = inlined_call_operand.vmem [shape: f32[4], index: 4, kind: input, shape index: {}]
  %s5 = inlined_call_operand.hbm [shape: f32[2,4,2,128], index: 5, kind: output, shape index: {}]
  %s6 = sld [smem:[#allocation0]]
  $region50: #{tpu_custom_call.1} parent=0
    _
  %s8 = ssub.s32 1, %s6
  %s9 = scalar_select 0, %s8, %s6
  $region1: #{tpu_custom_call.1} parent=0
    #allocation2 [shape = 'u8[8192]{0}', space=vmem, size = 0x2000, scoped, tag = 'input window, operand 0, single buffered']
    #allocation3 [shape = 's32[1]{0}', space=sflag, size = 0x4, scoped, tag = 'scoped memory for tpu_custom_call.1']
    #allocation4 [shape = 's32[1]{0}', space=sflag, size = 0x4, scoped, tag = 'scoped memory for tpu_custom_call.1']
    #allocation5 [shape = 's32[1]{0}', space=sflag, size = 0x4, scoped, tag = 'scoped memory for tpu_custom_call.1']
    #allocation6 [shape = 'u8[4096]{0}', space=smem, size = 0x1000, scoped, tag = 'input window, operand 1, single buffered']
    #allocation7 [shape = 'u8[512]{0}', space=smem, size = 0x200, scoped, tag = 'input window, operand 2, single buffered']
    #allocation8 [shape = 's32[1]{0}', space=sflag, size = 0x4, scoped, tag = 'scoped memory for tpu_custom_call.1']
    #allocation9 [shape = 'u8[2048]{0}', space=smem, size = 0x800, scoped, tag = 'input window, operand 3, single buffered']
    #allocation10 [shape = 'u8[512]{0}', space=smem, size = 0x200, scoped, tag = 'input window, operand 4, single buffered']
    #allocation11 [shape = 's32[1]{0}', space=sflag, size = 0x4, scoped, tag = 'scoped memory for tpu_custom_call.1']
    #allocation12 [shape = 'u8[8192]{0}', space=vmem, size = 0x2000, scoped, tag = 'output window, operand 0, single buffered']
    %10 = vsyncpa [#allocation3], 0
    %11 = vsyncpa [#allocation5], 0
    %12 = vsyncpa [#allocation8], 0
    %13 = vsyncpa [#allocation11], 0
    %14 = vsyncpa [#allocation4], 0
    // Predicated region
    $region2: #{tpu_custom_call.1} parent=1 // pred_check
      _
    $region3: #{tpu_custom_call.1} parent=1 // pred_check_branch
      %16 = sbr.rel (0) target = $region5
    $region4: #{tpu_custom_call.1} parent=1 // pred_region
      %18 = vsyncadd [#allocation3], 0
      %s19 = sshll.u32 %s0, 4
      %s20 = int_to_ptr.hbm [resolvable:$true] %s19
      %s21 = sshll.u32 [#allocation2], 4
      %s22 = int_to_ptr.vmem [resolvable:$true] %s21
      %27 = dma.hbm_to_vmem [thread:$0]  %s20, 256, %s22, [#allocation3], 32, 32, 2
    $region5: #{tpu_custom_call.1} parent=1 // pred_fallthru
      _
    // Predicated region
    $region6: #{tpu_custom_call.1} parent=1 // pred_check
      _
    $region7: #{tpu_custom_call.1} parent=1 // pred_check_branch
      %29 = sbr.rel (0) target = $region9
    $region8: #{tpu_custom_call.1} parent=1 // pred_region
      %31 = vsyncadd [#allocation5], 0
      %s33 = sshll.u32 %s1, 4
      %s34 = int_to_ptr.vmem [resolvable:$true] %s33
      %36 = dma.vmem_to_smem %s34, 128, [#allocation6], [#allocation5]
    $region9: #{tpu_custom_call.1} parent=1 // pred_fallthru
      _
    // Predicated region
    $region10: #{tpu_custom_call.1} parent=1 // pred_check
      _
    $region11: #{tpu_custom_call.1} parent=1 // pred_check_branch
      %38 = sbr.rel (0) target = $region13
    $region12: #{tpu_custom_call.1} parent=1 // pred_region
      %40 = vsyncadd [#allocation8], 0
      %s42 = sshll.u32 %s2, 4
      %s43 = int_to_ptr.vmem [resolvable:$true] %s42
      %45 = dma.vmem_to_smem %s43, 16, [#allocation7], [#allocation8]
    $region13: #{tpu_custom_call.1} parent=1 // pred_fallthru
      _
    // Predicated region
    $region14: #{tpu_custom_call.1} parent=1 // pred_check
      _
    $region15: #{tpu_custom_call.1} parent=1 // pred_check_branch
      %47 = sbr.rel (0) target = $region17
    $region16: #{tpu_custom_call.1} parent=1 // pred_region
      %49 = vsyncadd [#allocation8], 0
      %s51 = sshll.u32 %s3, 4
      %s52 = int_to_ptr.vmem [resolvable:$true] %s51
      %54 = dma.vmem_to_smem %s52, 64, [#allocation9], [#allocation8]
    $region17: #{tpu_custom_call.1} parent=1 // pred_fallthru
      _
    // Predicated region
    $region18: #{tpu_custom_call.1} parent=1 // pred_check
      _
    $region19: #{tpu_custom_call.1} parent=1 // pred_check_branch
      %56 = sbr.rel (0) target = $region21
    $region20: #{tpu_custom_call.1} parent=1 // pred_region
      %58 = vsyncadd [#allocation11], 0
      %s60 = sshll.u32 %s4, 4
      %s61 = int_to_ptr.vmem [resolvable:$true] %s60
      %63 = dma.vmem_to_smem %s61, 16, [#allocation10], [#allocation11]
    $region21: #{tpu_custom_call.1} parent=1 // pred_fallthru
      _
    // Predicated region
    $region22: #{tpu_custom_call.1} parent=1 // pred_check
      _
    $region23: #{tpu_custom_call.1} parent=1 // pred_check_branch
      %65 = sbr.rel (0) target = $region25
    $region24: #{tpu_custom_call.1} parent=1 // pred_region
      %67 = dma.done [#allocation3], 256
    $region25: #{tpu_custom_call.1} parent=1 // pred_fallthru
      _
    // Predicated region
    $region26: #{tpu_custom_call.1} parent=1 // pred_check
      _
    $region27: #{tpu_custom_call.1} parent=1 // pred_check_branch
      %69 = sbr.rel (0) target = $region29
    $region28: #{tpu_custom_call.1} parent=1 // pred_region
      %71 = dma.done [#allocation5], 128
    $region29: #{tpu_custom_call.1} parent=1 // pred_fallthru
      _
    // Predicated region
    $region30: #{tpu_custom_call.1} parent=1 // pred_check
      _
    $region31: #{tpu_custom_call.1} parent=1 // pred_check_branch
      %73 = sbr.rel (0) target = $region33
    $region32: #{tpu_custom_call.1} parent=1 // pred_region
      %75 = dma.done [#allocation8], 16
    $region33: #{tpu_custom_call.1} parent=1 // pred_fallthru
      _
    // Predicated region
    $region34: #{tpu_custom_call.1} parent=1 // pred_check
      _
    $region35: #{tpu_custom_call.1} parent=1 // pred_check_branch
      %77 = sbr.rel (0) target = $region37
    $region36: #{tpu_custom_call.1} parent=1 // pred_region
      %79 = dma.done [#allocation8], 64
    $region37: #{tpu_custom_call.1} parent=1 // pred_fallthru
      _
    // Predicated region
    $region38: #{tpu_custom_call.1} parent=1 // pred_check
      _
    $region39: #{tpu_custom_call.1} parent=1 // pred_check_branch
      %81 = sbr.rel (0) target = $region41
    $region40: #{tpu_custom_call.1} parent=1 // pred_region
      %83 = dma.done [#allocation11], 16
    $region41: #{tpu_custom_call.1} parent=1 // pred_fallthru
      _
    %84 = sfence
    %s85 = sld [smem:[#allocation6]]
    %s86 = sld [smem:[#allocation6 + $0x1]]
    %s87 = sld [smem:[#allocation6 + $0x2]]
    %s88 = sld [smem:[#allocation6 + $0x3]]
    %s89 = sld [smem:[#allocation6 + $0x80]]
    %s90 = sld [smem:[#allocation6 + $0x81]]
    %s91 = sld [smem:[#allocation6 + $0x82]]
    %s92 = sld [smem:[#allocation6 + $0x83]]
    %s93 = sld [smem:[#allocation6 + $0x100]]
    %s94 = sld [smem:[#allocation6 + $0x101]]
    %s95 = sld [smem:[#allocation6 + $0x102]]
    %s96 = sld [smem:[#allocation6 + $0x103]]
    %s97 = sld [smem:[#allocation6 + $0x180]]
    %s98 = sld [smem:[#allocation6 + $0x181]]
    %s99 = sld [smem:[#allocation6 + $0x182]]
    %s100 = sld [smem:[#allocation6 + $0x183]]
    %s101 = sld [smem:[#allocation6 + $0x200]]
    %s102 = sld [smem:[#allocation6 + $0x201]]
    %s103 = sld [smem:[#allocation6 + $0x202]]
    %s104 = sld [smem:[#allocation6 + $0x203]]
    %s105 = sld [smem:[#allocation6 + $0x280]]
    %s106 = sld [smem:[#allocation6 + $0x281]]
    %s107 = sld [smem:[#allocation6 + $0x282]]
    %s108 = sld [smem:[#allocation6 + $0x283]]
    %s109 = sld [smem:[#allocation6 + $0x300]]
    %s110 = sld [smem:[#allocation6 + $0x301]]
    %s111 = sld [smem:[#allocation6 + $0x302]]
    %s112 = sld [smem:[#allocation6 + $0x303]]
    %s113 = sld [smem:[#allocation6 + $0x380]]
    %s114 = sld [smem:[#allocation6 + $0x381]]
    %s115 = sld [smem:[#allocation6 + $0x382]]
    %s116 = sld [smem:[#allocation6 + $0x383]]
    %s117 = sld [smem:[#allocation7]]
    %s118 = sld [smem:[#allocation7 + $0x1]]
    %s119 = sld [smem:[#allocation7 + $0x2]]
    %s120 = sld [smem:[#allocation7 + $0x3]]
    %s121 = sld [smem:[#allocation7 + $0x4]]
    %s122 = sld [smem:[#allocation7 + $0x5]]
    %s123 = sld [smem:[#allocation7 + $0x6]]
    %s124 = sld [smem:[#allocation7 + $0x7]]
    %s125 = sld [smem:[#allocation9]]
    %s126 = sld [smem:[#allocation9 + $0x1]]
    %s127 = sld [smem:[#allocation9 + $0x2]]
    %s128 = sld [smem:[#allocation9 + $0x3]]
    %s129 = sld [smem:[#allocation9 + $0x4]]
    %s130 = sld [smem:[#allocation9 + $0x5]]
    %s131 = sld [smem:[#allocation9 + $0x6]]
    %s132 = sld [smem:[#allocation9 + $0x7]]
    %s133 = sld [smem:[#allocation9 + $0x80]]
    %s134 = sld [smem:[#allocation9 + $0x81]]
    %s135 = sld [smem:[#allocation9 + $0x82]]
    %s136 = sld [smem:[#allocation9 + $0x83]]
    %s137 = sld [smem:[#allocation9 + $0x84]]
    %s138 = sld [smem:[#allocation9 + $0x85]]
    %s139 = sld [smem:[#allocation9 + $0x86]]
    %s140 = sld [smem:[#allocation9 + $0x87]]
    %s141 = sld [smem:[#allocation9 + $0x100]]
    %s142 = sld [smem:[#allocation9 + $0x101]]
    %s143 = sld [smem:[#allocation9 + $0x102]]
    %s144 = sld [smem:[#allocation9 + $0x103]]
    %s145 = sld [smem:[#allocation9 + $0x104]]
    %s146 = sld [smem:[#allocation9 + $0x105]]
    %s147 = sld [smem:[#allocation9 + $0x106]]
    %s148 = sld [smem:[#allocation9 + $0x107]]
    %s149 = sld [smem:[#allocation9 + $0x180]]
    %s150 = sld [smem:[#allocation9 + $0x181]]
    %s151 = sld [smem:[#allocation9 + $0x182]]
    %s152 = sld [smem:[#allocation9 + $0x183]]
    %s153 = sld [smem:[#allocation9 + $0x184]]
    %s154 = sld [smem:[#allocation9 + $0x185]]
    %s155 = sld [smem:[#allocation9 + $0x186]]
    %s156 = sld [smem:[#allocation9 + $0x187]]
    %s157 = sld [smem:[#allocation10]]
    %s158 = sld [smem:[#allocation10 + $0x1]]
    %s159 = sld [smem:[#allocation10 + $0x2]]
    %s160 = sld [smem:[#allocation10 + $0x3]]
    %v161 = vld [vmem:[#allocation2] sm:$0x3]
    %s162 = scalar_lea.vmem [#allocation2], 2
    %v163 = vld [vmem:[%s162] sm:$0x3]
    %s164 = scalar_lea.vmem [#allocation2], 4
    %v165 = vld [vmem:[%s164] sm:$0x3]
    %s166 = scalar_lea.vmem [#allocation2], 6
    %v167 = vld [vmem:[%s166] sm:$0x3]
    %v168 = vstv %s85
    %v169 = vmul.f32 %v161, %v168
    %v170 = vstv %s86
    %v171 = vmul.f32 %v163, %v170
    %v172 = vadd.f32 %v169, %v171
    %v173 = vstv %s87
    %v174 = vmul.f32 %v165, %v173
    %v175 = vadd.f32 %v172, %v174
    %v176 = vstv %s88
    %v177 = vmul.f32 %v167, %v176
    %v178 = vadd.f32 %v175, %v177
    %v179 = vstv %s117
    %v180 = vadd.f32 %v178, %v179
    %v181 = vmax.f32 %v180, 0.0
    %v182 = vstv %s89
    %v183 = vmul.f32 %v161, %v182
    %v184 = vstv %s90
    %v185 = vmul.f32 %v163, %v184
    %v186 = vadd.f32 %v183, %v185
    %v187 = vstv %s91
    %v188 = vmul.f32 %v165, %v187
    %v189 = vadd.f32 %v186, %v188
    %v190 = vstv %s92
    %v191 = vmul.f32 %v167, %v190
    %v192 = vadd.f32 %v189, %v191
    %v193 = vstv %s118
    %v194 = vadd.f32 %v192, %v193
    %v195 = vmax.f32 %v194, 0.0
    %v196 = vstv %s93
    %v197 = vmul.f32 %v161, %v196
    %v198 = vstv %s94
    %v199 = vmul.f32 %v163, %v198
    %v200 = vadd.f32 %v197, %v199
    %v201 = vstv %s95
    %v202 = vmul.f32 %v165, %v201
    %v203 = vadd.f32 %v200, %v202
    %v204 = vstv %s96
    %v205 = vmul.f32 %v167, %v204
    %v206 = vadd.f32 %v203, %v205
    %v207 = vstv %s119
    %v208 = vadd.f32 %v206, %v207
    %v209 = vmax.f32 %v208, 0.0
    %v210 = vstv %s97
    %v211 = vmul.f32 %v161, %v210
    %v212 = vstv %s98
    %v213 = vmul.f32 %v163, %v212
    %v214 = vadd.f32 %v211, %v213
    %v215 = vstv %s99
    %v216 = vmul.f32 %v165, %v215
    %v217 = vadd.f32 %v214, %v216
    %v218 = vstv %s100
    %v219 = vmul.f32 %v167, %v218
    %v220 = vadd.f32 %v217, %v219
    %v221 = vstv %s120
    %v222 = vadd.f32 %v220, %v221
    %v223 = vmax.f32 %v222, 0.0
    %v224 = vstv %s101
    %v225 = vmul.f32 %v161, %v224
    %v226 = vstv %s102
    %v227 = vmul.f32 %v163, %v226
    %v228 = vadd.f32 %v225, %v227
    %v229 = vstv %s103
    %v230 = vmul.f32 %v165, %v229
    %v231 = vadd.f32 %v228, %v230
    %v232 = vstv %s104
    %v233 = vmul.f32 %v167, %v232
    %v234 = vadd.f32 %v231, %v233
    %v235 = vstv %s121
    %v236 = vadd.f32 %v234, %v235
    %v237 = vmax.f32 %v236, 0.0
    %v238 = vstv %s105
    %v239 = vmul.f32 %v161, %v238
    %v240 = vstv %s106
    %v241 = vmul.f32 %v163, %v240
    %v242 = vadd.f32 %v239, %v241
    %v243 = vstv %s107
    %v244 = vmul.f32 %v165, %v243
    %v245 = vadd.f32 %v242, %v244
    %v246 = vstv %s108
    %v247 = vmul.f32 %v167, %v246
    %v248 = vadd.f32 %v245, %v247
    %v249 = vstv %s122
    %v250 = vadd.f32 %v248, %v249
    %v251 = vmax.f32 %v250, 0.0
    %v252 = vstv %s109
    %v253 = vmul.f32 %v161, %v252
    %v254 = vstv %s110
    %v255 = vmul.f32 %v163, %v254
    %v256 = vadd.f32 %v253, %v255
    %v257 = vstv %s111
    %v258 = vmul.f32 %v165, %v257
    %v259 = vadd.f32 %v256, %v258
    %v260 = vstv %s112
    %v261 = vmul.f32 %v167, %v260
    %v262 = vadd.f32 %v259, %v261
    %v263 = vstv %s123
    %v264 = vadd.f32 %v262, %v263
    %v265 = vmax.f32 %v264, 0.0
    %v266 = vstv %s113
    %v267 = vmul.f32 %v161, %v266
    %v268 = vstv %s114
    %v269 = vmul.f32 %v163, %v268
    %v270 = vadd.f32 %v267, %v269
    %v271 = vstv %s115
    %v272 = vmul.f32 %v165, %v271
    %v273 = vadd.f32 %v270, %v272
    %v274 = vstv %s116
    %v275 = vmul.f32 %v167, %v274
    %v276 = vadd.f32 %v273, %v275
    %v277 = vstv %s124
    %v278 = vadd.f32 %v276, %v277
    %v279 = vmax.f32 %v278, 0.0
    %v280 = vstv %s125
    %v281 = vmul.f32 %v181, %v280
    %v282 = vstv %s126
    %v283 = vmul.f32 %v195, %v282
    %v284 = vadd.f32 %v281, %v283
    %v285 = vstv %s127
    %v286 = vmul.f32 %v209, %v285
    %v287 = vadd.f32 %v284, %v286
    %v288 = vstv %s128
    %v289 = vmul.f32 %v223, %v288
    %v290 = vadd.f32 %v287, %v289
    %v291 = vstv %s129
    %v292 = vmul.f32 %v237, %v291
    %v293 = vadd.f32 %v290, %v292
    %v294 = vstv %s130
    %v295 = vmul.f32 %v251, %v294
    %v296 = vadd.f32 %v293, %v295
    %v297 = vstv %s131
    %v298 = vmul.f32 %v265, %v297
    %v299 = vadd.f32 %v296, %v298
    %v300 = vstv %s132
    %v301 = vmul.f32 %v279, %v300
    %v302 = vadd.f32 %v299, %v301
    %v303 = vstv %s157
    %v304 = vadd.f32 %v302, %v303
    %v305 = vadd.f32 %v304, %v161
    %v306 = vmax.f32 %v305, 0.0
    %307 = vst [vmem:[#allocation12] sm:$0x3] %v306
    %v308 = vstv %s133
    %v309 = vmul.f32 %v181, %v308
    %v310 = vstv %s134
    %v311 = vmul.f32 %v195, %v310
    %v312 = vadd.f32 %v309, %v311
    %v313 = vstv %s135
    %v314 = vmul.f32 %v209, %v313
    %v315 = vadd.f32 %v312, %v314
    %v316 = vstv %s136
    %v317 = vmul.f32 %v223, %v316
    %v318 = vadd.f32 %v315, %v317
    %v319 = vstv %s137
    %v320 = vmul.f32 %v237, %v319
    %v321 = vadd.f32 %v318, %v320
    %v322 = vstv %s138
    %v323 = vmul.f32 %v251, %v322
    %v324 = vadd.f32 %v321, %v323
    %v325 = vstv %s139
    %v326 = vmul.f32 %v265, %v325
    %v327 = vadd.f32 %v324, %v326
    %v328 = vstv %s140
    %v329 = vmul.f32 %v279, %v328
    %v330 = vadd.f32 %v327, %v329
    %v331 = vstv %s158
    %v332 = vadd.f32 %v330, %v331
    %v333 = vadd.f32 %v332, %v163
    %v334 = vmax.f32 %v333, 0.0
    %s335 = scalar_lea.vmem [#allocation12], 2
    %336 = vst [vmem:[%s335] sm:$0x3] %v334
    %v337 = vstv %s141
    %v338 = vmul.f32 %v181, %v337
    %v339 = vstv %s142
    %v340 = vmul.f32 %v195, %v339
    %v341 = vadd.f32 %v338, %v340
    %v342 = vstv %s143
    %v343 = vmul.f32 %v209, %v342
    %v344 = vadd.f32 %v341, %v343
    %v345 = vstv %s144
    %v346 = vmul.f32 %v223, %v345
    %v347 = vadd.f32 %v344, %v346
    %v348 = vstv %s145
    %v349 = vmul.f32 %v237, %v348
    %v350 = vadd.f32 %v347, %v349
    %v351 = vstv %s146
    %v352 = vmul.f32 %v251, %v351
    %v353 = vadd.f32 %v350, %v352
    %v354 = vstv %s147
    %v355 = vmul.f32 %v265, %v354
    %v356 = vadd.f32 %v353, %v355
    %v357 = vstv %s148
    %v358 = vmul.f32 %v279, %v357
    %v359 = vadd.f32 %v356, %v358
    %v360 = vstv %s159
    %v361 = vadd.f32 %v359, %v360
    %v362 = vadd.f32 %v361, %v165
    %v363 = vmax.f32 %v362, 0.0
    %s364 = scalar_lea.vmem [#allocation12], 4
    %365 = vst [vmem:[%s364] sm:$0x3] %v363
    %v366 = vstv %s149
    %v367 = vmul.f32 %v181, %v366
    %v368 = vstv %s150
    %v369 = vmul.f32 %v195, %v368
    %v370 = vadd.f32 %v367, %v369
    %v371 = vstv %s151
    %v372 = vmul.f32 %v209, %v371
    %v373 = vadd.f32 %v370, %v372
    %v374 = vstv %s152
    %v375 = vmul.f32 %v223, %v374
    %v376 = vadd.f32 %v373, %v375
    %v377 = vstv %s153
    %v378 = vmul.f32 %v237, %v377
    %v379 = vadd.f32 %v376, %v378
    %v380 = vstv %s154
    %v381 = vmul.f32 %v251, %v380
    %v382 = vadd.f32 %v379, %v381
    %v383 = vstv %s155
    %v384 = vmul.f32 %v265, %v383
    %v385 = vadd.f32 %v382, %v384
    %v386 = vstv %s156
    %v387 = vmul.f32 %v279, %v386
    %v388 = vadd.f32 %v385, %v387
    %v389 = vstv %s160
    %v390 = vadd.f32 %v388, %v389
    %v391 = vadd.f32 %v390, %v167
    %v392 = vmax.f32 %v391, 0.0
    %s393 = scalar_lea.vmem [#allocation12], 6
    %394 = vst [vmem:[%s393] sm:$0x3] %v392
    %s395 = scalar_lea.vmem [#allocation2], 8
    %v396 = vld [vmem:[%s395] sm:$0x3]
    %s397 = scalar_lea.vmem [#allocation2], 10
    %v398 = vld [vmem:[%s397] sm:$0x3]
    %s399 = scalar_lea.vmem [#allocation2], 12
    %v400 = vld [vmem:[%s399] sm:$0x3]
    %s401 = scalar_lea.vmem [#allocation2], 14
    %v402 = vld [vmem:[%s401] sm:$0x3]
    %v403 = vmul.f32 %v396, %v168
    %v404 = vmul.f32 %v398, %v170
    %v405 = vadd.f32 %v403, %v404
    %v406 = vmul.f32 %v400, %v173
    %v407 = vadd.f32 %v405, %v406
    %v408 = vmul.f32 %v402, %v176
    %v409 = vadd.f32 %v407, %v408
    %v410 = vadd.f32 %v409, %v179
    %v411 = vmax.f32 %v410, 0.0
    %v412 = vmul.f32 %v396, %v182
    %v413 = vmul.f32 %v398, %v184
    %v414 = vadd.f32 %v412, %v413
    %v415 = vmul.f32 %v400, %v187
    %v416 = vadd.f32 %v414, %v415
    %v417 = vmul.f32 %v402, %v190
    %v418 = vadd.f32 %v416, %v417
    %v419 = vadd.f32 %v418, %v193
    %v420 = vmax.f32 %v419, 0.0
    %v421 = vmul.f32 %v396, %v196
    %v422 = vmul.f32 %v398, %v198
    %v423 = vadd.f32 %v421, %v422
    %v424 = vmul.f32 %v400, %v201
    %v425 = vadd.f32 %v423, %v424
    %v426 = vmul.f32 %v402, %v204
    %v427 = vadd.f32 %v425, %v426
    %v428 = vadd.f32 %v427, %v207
    %v429 = vmax.f32 %v428, 0.0
    %v430 = vmul.f32 %v396, %v210
    %v431 = vmul.f32 %v398, %v212
    %v432 = vadd.f32 %v430, %v431
    %v433 = vmul.f32 %v400, %v215
    %v434 = vadd.f32 %v432, %v433
    %v435 = vmul.f32 %v402, %v218
    %v436 = vadd.f32 %v434, %v435
    %v437 = vadd.f32 %v436, %v221
    %v438 = vmax.f32 %v437, 0.0
    %v439 = vmul.f32 %v396, %v224
    %v440 = vmul.f32 %v398, %v226
    %v441 = vadd.f32 %v439, %v440
    %v442 = vmul.f32 %v400, %v229
    %v443 = vadd.f32 %v441, %v442
    %v444 = vmul.f32 %v402, %v232
    %v445 = vadd.f32 %v443, %v444
    %v446 = vadd.f32 %v445, %v235
    %v447 = vmax.f32 %v446, 0.0
    %v448 = vmul.f32 %v396, %v238
    %v449 = vmul.f32 %v398, %v240
    %v450 = vadd.f32 %v448, %v449
    %v451 = vmul.f32 %v400, %v243
    %v452 = vadd.f32 %v450, %v451
    %v453 = vmul.f32 %v402, %v246
    %v454 = vadd.f32 %v452, %v453
    %v455 = vadd.f32 %v454, %v249
    %v456 = vmax.f32 %v455, 0.0
    %v457 = vmul.f32 %v396, %v252
    %v458 = vmul.f32 %v398, %v254
    %v459 = vadd.f32 %v457, %v458
    %v460 = vmul.f32 %v400, %v257
    %v461 = vadd.f32 %v459, %v460
    %v462 = vmul.f32 %v402, %v260
    %v463 = vadd.f32 %v461, %v462
    %v464 = vadd.f32 %v463, %v263
    %v465 = vmax.f32 %v464, 0.0
    %v466 = vmul.f32 %v396, %v266
    %v467 = vmul.f32 %v398, %v268
    %v468 = vadd.f32 %v466, %v467
    %v469 = vmul.f32 %v400, %v271
    %v470 = vadd.f32 %v468, %v469
    %v471 = vmul.f32 %v402, %v274
    %v472 = vadd.f32 %v470, %v471
    %v473 = vadd.f32 %v472, %v277
    %v474 = vmax.f32 %v473, 0.0
    %v475 = vmul.f32 %v411, %v280
    %v476 = vmul.f32 %v420, %v282
    %v477 = vadd.f32 %v475, %v476
    %v478 = vmul.f32 %v429, %v285
    %v479 = vadd.f32 %v477, %v478
    %v480 = vmul.f32 %v438, %v288
    %v481 = vadd.f32 %v479, %v480
    %v482 = vmul.f32 %v447, %v291
    %v483 = vadd.f32 %v481, %v482
    %v484 = vmul.f32 %v456, %v294
    %v485 = vadd.f32 %v483, %v484
    %v486 = vmul.f32 %v465, %v297
    %v487 = vadd.f32 %v485, %v486
    %v488 = vmul.f32 %v474, %v300
    %v489 = vadd.f32 %v487, %v488
    %v490 = vadd.f32 %v489, %v303
    %v491 = vadd.f32 %v490, %v396
    %v492 = vmax.f32 %v491, 0.0
    %s493 = scalar_lea.vmem [#allocation12], 8
    %494 = vst [vmem:[%s493] sm:$0x3] %v492
    %v495 = vmul.f32 %v411, %v308
    %v496 = vmul.f32 %v420, %v310
    %v497 = vadd.f32 %v495, %v496
    %v498 = vmul.f32 %v429, %v313
    %v499 = vadd.f32 %v497, %v498
    %v500 = vmul.f32 %v438, %v316
    %v501 = vadd.f32 %v499, %v500
    %v502 = vmul.f32 %v447, %v319
    %v503 = vadd.f32 %v501, %v502
    %v504 = vmul.f32 %v456, %v322
    %v505 = vadd.f32 %v503, %v504
    %v506 = vmul.f32 %v465, %v325
    %v507 = vadd.f32 %v505, %v506
    %v508 = vmul.f32 %v474, %v328
    %v509 = vadd.f32 %v507, %v508
    %v510 = vadd.f32 %v509, %v331
    %v511 = vadd.f32 %v510, %v398
    %v512 = vmax.f32 %v511, 0.0
    %s513 = scalar_lea.vmem [#allocation12], 10
    %514 = vst [vmem:[%s513] sm:$0x3] %v512
    %v515 = vmul.f32 %v411, %v337
    %v516 = vmul.f32 %v420, %v339
    %v517 = vadd.f32 %v515, %v516
    %v518 = vmul.f32 %v429, %v342
    %v519 = vadd.f32 %v517, %v518
    %v520 = vmul.f32 %v438, %v345
    %v521 = vadd.f32 %v519, %v520
    %v522 = vmul.f32 %v447, %v348
    %v523 = vadd.f32 %v521, %v522
    %v524 = vmul.f32 %v456, %v351
    %v525 = vadd.f32 %v523, %v524
    %v526 = vmul.f32 %v465, %v354
    %v527 = vadd.f32 %v525, %v526
    %v528 = vmul.f32 %v474, %v357
    %v529 = vadd.f32 %v527, %v528
    %v530 = vadd.f32 %v529, %v360
    %v531 = vadd.f32 %v530, %v400
    %v532 = vmax.f32 %v531, 0.0
    %s533 = scalar_lea.vmem [#allocation12], 12
    %534 = vst [vmem:[%s533] sm:$0x3] %v532
    %v535 = vmul.f32 %v411, %v366
    %v536 = vmul.f32 %v420, %v368
    %v537 = vadd.f32 %v535, %v536
    %v538 = vmul.f32 %v429, %v371
    %v539 = vadd.f32 %v537, %v538
    %v540 = vmul.f32 %v438, %v374
    %v541 = vadd.f32 %v539, %v540
    %v542 = vmul.f32 %v447, %v377
    %v543 = vadd.f32 %v541, %v542
    %v544 = vmul.f32 %v456, %v380
    %v545 = vadd.f32 %v543, %v544
    %v546 = vmul.f32 %v465, %v383
    %v547 = vadd.f32 %v545, %v546
    %v548 = vmul.f32 %v474, %v386
    %v549 = vadd.f32 %v547, %v548
    %v550 = vadd.f32 %v549, %v389
    %v551 = vadd.f32 %v550, %v402
    %v552 = vmax.f32 %v551, 0.0
    %s553 = scalar_lea.vmem [#allocation12], 14
    %554 = vst [vmem:[%s553] sm:$0x3] %v552
    // Predicated region
    $region42: #{tpu_custom_call.1} parent=1 // pred_check
      _
    $region43: #{tpu_custom_call.1} parent=1 // pred_check_branch
      %556 = sbr.rel (0) target = $region45
    $region44: #{tpu_custom_call.1} parent=1 // pred_region
      %558 = vsyncadd [#allocation4], 0
      %s559 = sshll.u32 [#allocation12], 4
      %s560 = int_to_ptr.vmem [resolvable:$true] %s559
      %s561 = sshll.u32 %s5, 4
      %s562 = int_to_ptr.hbm [resolvable:$true] %s561
      %567 = dma.vmem_to_hbm [thread:$0]  %s560, 256, %s562, [#allocation4], 32, 32, 2
    $region45: #{tpu_custom_call.1} parent=1 // pred_fallthru
      _
    // Predicated region
    $region46: #{tpu_custom_call.1} parent=1 // pred_check
      _
    $region47: #{tpu_custom_call.1} parent=1 // pred_check_branch
      %569 = sbr.rel (0) target = $region49
    $region48: #{tpu_custom_call.1} parent=1 // pred_region
      %571 = dma.done [#allocation4], 256
    $region49: #{tpu_custom_call.1} parent=1 // pred_fallthru
      _
    %572 = vsyncpa [#allocation3], 1
    %573 = vsyncpa [#allocation4], 1
    %574 = vsyncpa [#allocation5], 1
    %575 = vsyncpa [#allocation8], 1
    %576 = vsyncpa [#allocation11], 1

</llo_original>
